<compile_context>
chip_gen: v5e
topology: v5e:2x2
jax: 0.10.0
libtpu: 0.0.40
codegen_flags: <defaults>
</compile_context>

<pallas_src>
import functools

import jax
import jax.numpy as jnp
import numpy as np
from jax.experimental import pallas as pl
from jax.experimental.pallas import tpu as pltpu


def _hd_kernel(row_ref, col_ref, d2_ref, out_ref, *, num_classes, ignore_index, slab):
    """Per-(batch, class) Hausdorff partial sum.

    row_ref : (3, N) f32  row0 = (softmax - onehot)^2, row1 = gt fg mask,
                          row2 = pred fg mask   (lane-dense).
    col_ref : (N, 2) f32  [gt fg, pred fg] in column (sublane) layout, needed
                          for the XOR mask along the reduced axis of d2.
    d2_ref  : (N, N) f32  pairwise squared pixel distances (VMEM resident).
    out_ref : (1, 1) f32  per-(b, c) partial sum of error * dist.
    """
    N = d2_ref.shape[0]
    nslab = N // slab
    INF = jnp.float32(1e30)
    BIG = jnp.float32(5e29)

    def compute_and_store():
        rowv = row_ref[...]                        # (3, N)
        err_row = rowv[0:1, :]                     # (1, N)
        gt_row = rowv[1:2, :]
        pr_row = rowv[2:3, :]

        def body(s, carry):
            gmin, pmin = carry
            off = pl.multiple_of(s * slab, slab)
            d2s = d2_ref[pl.ds(off, slab), :]      # (slab, N)
            cols = col_ref[pl.ds(off, slab), :]    # (slab, 2)
            gt_col = cols[:, 0:1]                  # (slab, 1)
            pr_col = cols[:, 1:2]
            # Single XOR-masked min per dtm: distance^2 to the nearest pixel of
            # the OPPOSITE set (exactly one of edt(fg)/edt(~fg) is 0 per pixel,
            # so their sum equals this one masked min).
            g = jnp.min(jnp.where(gt_col != gt_row, d2s, INF), axis=0, keepdims=True)
            p = jnp.min(jnp.where(pr_col != pr_row, d2s, INF), axis=0, keepdims=True)
            return jnp.minimum(gmin, g), jnp.minimum(pmin, p)

        init = (jnp.full((1, N), INF, jnp.float32),
                jnp.full((1, N), INF, jnp.float32))
        gmin, pmin = jax.lax.fori_loop(0, nslab, body, init)

        # Degenerate single-class mask (all fg or all bg) -> dtm = 0, matching
        # the reference convention.
        # TODO(synk): scipy.distance_transform_edt is implementation-defined when
        # no zero pixel exists; the all-foreground case is defined as 0 here.
        pr_dtm2 = jnp.where(pmin > BIG, 0.0, pmin)      # pred dtm^2 (no sqrt needed)
        gt_d = jnp.floor(jnp.sqrt(jnp.where(gmin > BIG, 0.0, gmin)) + 1e-4)
        dist = pr_dtm2 + gt_d * gt_d                    # (1, N)
        out_ref[...] = jnp.sum(err_row * dist, axis=1, keepdims=True)   # (1, 1)

    if 0 <= ignore_index < num_classes:
        # classes equal to ignore_index skip the whole N^2 body
        out_ref[...] = jnp.zeros_like(out_ref)

        @pl.when(pl.program_id(1) != ignore_index)
        def _():
            compute_and_store()
    else:
        compute_and_store()


def hausdorff_distance_loss2(pred, target, *, loss_weight=1.0, ignore_index=255):
    """JAX/Pallas forward of HausdorffDistanceLoss2 (class_weight=None)."""
    B, C, H, W = pred.shape
    N = H * W

    # ---- hoisted per-pixel prep (O(B*C*N), trivial vs the O(N^2) kernel work) ----
    prob = jax.nn.softmax(pred.astype(jnp.float32), axis=1).reshape(B, C, N)
    tgt = target.astype(jnp.int32).reshape(B, 1, N)
    validf = (tgt != ignore_index).astype(jnp.float32)                       # (B,1,N)
    onehot = (jnp.clip(tgt, 0, C - 1)
              == jnp.arange(C, dtype=jnp.int32).reshape(1, C, 1)).astype(jnp.float32)
    err = (prob - onehot) ** 2                                               # (B,C,N)
    gt_fg = onehot * validf                                                  # {0,1}
    pr_fg = ((prob * validf) > 0.5).astype(jnp.float32)                      # {0,1}

    row_in = jnp.stack([err, gt_fg, pr_fg], axis=2).reshape(B * C, 3, N)     # lane-dense
    col_in = jnp.stack([gt_fg, pr_fg], axis=-1).reshape(B * C, N, 2)         # column layout

    # pairwise squared euclidean distances between flattened pixels (exact in f32),
    # built once; the kernel keeps it VMEM resident across the whole grid.
    idx = jnp.arange(N, dtype=jnp.int32)
    rr = (idx // W).astype(jnp.float32)
    cc = (idx % W).astype(jnp.float32)
    d2 = ((rr[:, None] - rr[None, :]) ** 2
          + (cc[:, None] - cc[None, :]) ** 2).astype(jnp.float32)            # (N, N)

    # slab size for the in-kernel masked-min reduction (bounds N^2 temporaries)
    slab = N
    for cand in (128, 64, 32, 16, 8):
        if N % cand == 0:
            slab = cand
            break

    kernel = functools.partial(_hd_kernel, num_classes=C,
                               ignore_index=ignore_index, slab=slab)

    # ---- generation-aware scoped-VMEM budget ----
    try:
        cap = int(getattr(pltpu.get_tpu_info(), "vmem_capacity_bytes", 0)) or (64 << 20)
    except Exception:
        cap = 64 << 20
    need = (N * N * 4              # d2, single-buffered resident
            + 2 * 8 * N * 4        # row block (3 rows pad to 8 sublanes) x 2 buffers
            + 2 * N * 128 * 4      # col block (2 lanes pad to 128) x 2 buffers
            + 6 * slab * N * 4     # masked-min slab temporaries
            + (4 << 20))           # misc / internal scratch headroom
    vmem_limit = int(min(max(need, 32 << 20), int(cap * 0.9)))

    def _run(d2_pipeline_mode):
        d2_kwargs = {} if d2_pipeline_mode is None else {"pipeline_mode": d2_pipeline_mode}
        return pl.pallas_call(
            kernel,
            out_shape=jax.ShapeDtypeStruct((B, C, 1, 1), jnp.float32),
            grid=(B, C),
            in_specs=[
                pl.BlockSpec((None, 3, N), lambda b, c: (b * C + c, 0, 0)),   # row data
                pl.BlockSpec((None, N, 2), lambda b, c: (b * C + c, 0, 0)),   # column fg masks
                pl.BlockSpec((N, N), lambda b, c: (0, 0), **d2_kwargs),       # d2 (resident)
            ],
            out_specs=pl.BlockSpec((None, None, 1, 1), lambda b, c: (b, c, 0, 0)),
            compiler_params=pltpu.CompilerParams(
                dimension_semantics=("parallel", "parallel"),
                vmem_limit_bytes=vmem_limit,
            ),
        )(row_in, col_in, d2)

    try:
        # d2's index_map is constant -> a second buffer is pure waste; single-buffer it.
        acc = _run(pl.Buffered(1))
    except Exception:
        # TODO(synk): pl.Buffered(1) single-buffering unavailable on this jax version;
        # fall back to the default double-buffered d2.
        acc = _run(None)

    # sum_c mean_{b,h,w}(err*dist) / C  ==  sum_all / (C*B*H*W)
    return loss_weight * jnp.sum(acc) / (C * B * H * W)


# ----------------------- pure numpy reference (for checking) -----------------
def _edt_brute(mask):
    """For True pixels: Euclidean distance to nearest False pixel; else 0."""
    H, W = mask.shape
    out = np.zeros((H, W), dtype=np.float64)
    bg = np.argwhere(~mask)
    if bg.size == 0:
        return out
    for i in range(H):
        for j in range(W):
            if mask[i, j]:
                d = np.sqrt(((bg - np.array([i, j])) ** 2).sum(axis=1)).min()
                out[i, j] = d
    return out


def reference_loss(pred, target, loss_weight=1.0, ignore_index=255):
    predf = np.asarray(pred, dtype=np.float32)
    target = np.asarray(target)
    B, C, H, W = predf.shape
    e = np.exp(predf - predf.max(axis=1, keepdims=True))
    sm = (e / e.sum(axis=1, keepdims=True)).astype(np.float64)
    t_clamped = np.clip(target, 0, C - 1)
    one_hot = (t_clamped[..., None] == np.arange(C)).astype(np.int64)  # (B,H,W,C)
    valid = (target != ignore_index).astype(np.int64)

    total = 0.0
    for i in range(C):
        if i == ignore_index:
            continue
        p = sm[:, i]
        t = one_hot[..., i].astype(np.float64)
        err = (p - t) ** 2
        dist = np.zeros((B, H, W))
        for b in range(B):
            fg = (one_hot[b, ..., i] * valid[b]) > 0.5
            if fg.any():
                g = np.floor(_edt_brute(fg) + _edt_brute(~fg))
            else:
                g = np.zeros((H, W))
            fgp = (p[b] * valid[b]) > 0.5
            if fgp.any():
                pd = _edt_brute(fgp) + _edt_brute(~fgp)
            else:
                pd = np.zeros((H, W))
            dist[b] = pd ** 2 + g ** 2
        total += (err * dist).mean()
    return loss_weight * total / C


if __name__ == "__main__":
    B, C, H, W = 2, 4, 16, 16
    key = jax.random.PRNGKey(0)
    k1, k2 = jax.random.split(key)
    pred = jax.random.normal(k1, (B, C, H, W), dtype=jnp.float32) * 2.0
    target = jax.random.randint(k2, (B, H, W), 0, C, dtype=jnp.int32)
    # a few ignored pixels to exercise the valid mask
    target = target.at[0, 0, :4].set(255)

    loss = hausdorff_distance_loss2(pred, target, loss_weight=1.0, ignore_index=255)
    loss = jax.block_until_ready(loss)

    ref = reference_loss(np.asarray(pred), np.asarray(target))
    assert np.allclose(float(loss), ref, rtol=1e-3, atol=1e-5), (float(loss), ref)

    print("KERNEL_OK")
</pallas_src>

<mosaic_0001>
module attributes {stable_mosaic.version = 11 : i64} {
  func.func @_hd_kernel(%arg0: i32, %arg1: i32, %arg2: memref<1x3x256xf32, #tpu.memory_space<vmem>>, %arg3: memref<1x256x2xf32, #tpu.memory_space<vmem>>, %arg4: memref<256x256xf32, #tpu.memory_space<vmem>>, %arg5: memref<1x1x1x1xf32, #tpu.memory_space<vmem>>) attributes {dimension_semantics = [#tpu.dimension_semantics<parallel>, #tpu.dimension_semantics<parallel>], iteration_bounds = array<i64: 2, 4>, scalar_prefetch = 0 : i64, scratch_operands = 0 : i64, tpu.core_type = #tpu.core_type<tc>, window_params = [{transform_indices = @transform_0, window_bounds = array<i64: 1, 3, 256>}, {transform_indices = @transform_1, window_bounds = array<i64: 1, 256, 2>}, {pipeline_mode = #tpu.pipeline_mode<synchronous>, transform_indices = @transform_2, window_bounds = array<i64: 256, 256>}, {transform_indices = @transform_3, window_bounds = array<i64: 1, 1, 1, 1>}]} {
    %c0 = arith.constant 0 : index
    %c0_0 = arith.constant 0 : index
    %c0_1 = arith.constant 0 : index
    %0 = vector.load %arg2[%c0, %c0_0, %c0_1] : memref<1x3x256xf32, #tpu.memory_space<vmem>>, vector<1x3x256xf32>
    %1 = vector.shape_cast %0 : vector<1x3x256xf32> to vector<3x256xf32>
    %2 = vector.extract_strided_slice %1 {offsets = [0, 0], sizes = [1, 256], strides = [1, 1]} : vector<3x256xf32> to vector<1x256xf32>
    %3 = vector.extract_strided_slice %1 {offsets = [1, 0], sizes = [1, 256], strides = [1, 1]} : vector<3x256xf32> to vector<1x256xf32>
    %4 = vector.extract_strided_slice %1 {offsets = [2, 0], sizes = [1, 256], strides = [1, 1]} : vector<3x256xf32> to vector<1x256xf32>
    %cst = arith.constant 1.000000e+30 : f32
    %5 = vector.broadcast %cst : f32 to vector<1x256xf32>
    %cst_2 = arith.constant 1.000000e+30 : f32
    %6 = vector.broadcast %cst_2 : f32 to vector<1x256xf32>
    %cst_3 = arith.constant 1.000000e+30 : f32
    %c0_i32 = arith.constant 0 : i32
    %c2_i32 = arith.constant 2 : i32
    %7 = arith.addi %c0_i32, %c2_i32 : i32
    %c1_i32 = arith.constant 1 : i32
    %8:2 = scf.for %arg6 = %c0_i32 to %7 step %c1_i32 iter_args(%arg7 = %5, %arg8 = %6) -> (vector<1x256xf32>, vector<1x256xf32>)  : i32 {
      %c128_i32 = arith.constant 128 : i32
      %29 = arith.muli %arg6, %c128_i32 : i32
      %30 = tpu.assume_multiple %29, 128 : i32
      %31 = arith.index_cast %30 : i32 to index
      %c0_15 = arith.constant 0 : index
      %32 = vector.load %arg4[%31, %c0_15] : memref<256x256xf32, #tpu.memory_space<vmem>>, vector<128x256xf32>
      %c0_16 = arith.constant 0 : index
      %33 = arith.index_cast %30 : i32 to index
      %c0_17 = arith.constant 0 : index
      %34 = vector.load %arg3[%c0_16, %33, %c0_17] : memref<1x256x2xf32, #tpu.memory_space<vmem>>, vector<1x128x2xf32>
      %35 = vector.shape_cast %34 : vector<1x128x2xf32> to vector<128x2xf32>
      %36 = vector.extract_strided_slice %35 {offsets = [0, 0], sizes = [128, 1], strides = [1, 1]} : vector<128x2xf32> to vector<128x1xf32>
      %37 = vector.extract_strided_slice %35 {offsets = [0, 1], sizes = [128, 1], strides = [1, 1]} : vector<128x2xf32> to vector<128x1xf32>
      %38 = vector.broadcast %36 : vector<128x1xf32> to vector<128x256xf32>
      %39 = vector.broadcast %3 : vector<1x256xf32> to vector<128x256xf32>
      %40 = arith.cmpf one, %38, %39 : vector<128x256xf32>
      %41 = vector.broadcast %cst_3 : f32 to vector<128x256xf32>
      %42 = arith.select %40, %32, %41 : vector<128x256xi1>, vector<128x256xf32>
      %cst_18 = arith.constant dense<0x7F800000> : vector<256xf32>
      %43 = vector.multi_reduction <minimumf>, %42, %cst_18 [0] : vector<128x256xf32> to vector<256xf32>
      %44 = vector.shape_cast %43 : vector<256xf32> to vector<1x256xf32>
      %45 = vector.broadcast %37 : vector<128x1xf32> to vector<128x256xf32>
      %46 = vector.broadcast %4 : vector<1x256xf32> to vector<128x256xf32>
      %47 = arith.cmpf one, %45, %46 : vector<128x256xf32>
      %48 = vector.broadcast %cst_3 : f32 to vector<128x256xf32>
      %49 = arith.select %47, %32, %48 : vector<128x256xi1>, vector<128x256xf32>
      %cst_19 = arith.constant dense<0x7F800000> : vector<256xf32>
      %50 = vector.multi_reduction <minimumf>, %49, %cst_19 [0] : vector<128x256xf32> to vector<256xf32>
      %51 = vector.shape_cast %50 : vector<256xf32> to vector<1x256xf32>
      %52 = arith.minimumf %arg7, %44 : vector<1x256xf32>
      %53 = arith.minimumf %arg8, %51 : vector<1x256xf32>
      scf.yield %52, %53 : vector<1x256xf32>, vector<1x256xf32>
    }
    %c2_i32_4 = arith.constant 2 : i32
    %cst_5 = arith.constant 5.000000e+29 : f32
    %9 = vector.broadcast %cst_5 : f32 to vector<1x256xf32>
    %10 = arith.cmpf ogt, %8#1, %9 : vector<1x256xf32>
    %cst_6 = arith.constant 0.000000e+00 : f32
    %11 = vector.broadcast %cst_6 : f32 to vector<1x256xf32>
    %12 = arith.select %10, %11, %8#1 : vector<1x256xi1>, vector<1x256xf32>
    %cst_7 = arith.constant 5.000000e+29 : f32
    %13 = vector.broadcast %cst_7 : f32 to vector<1x256xf32>
    %14 = arith.cmpf ogt, %8#0, %13 : vector<1x256xf32>
    %cst_8 = arith.constant 0.000000e+00 : f32
    %15 = vector.broadcast %cst_8 : f32 to vector<1x256xf32>
    %16 = arith.select %14, %15, %8#0 : vector<1x256xi1>, vector<1x256xf32>
    %17 = math.sqrt %16 : vector<1x256xf32>
    %cst_9 = arith.constant 9.99999974E-5 : f32
    %18 = vector.broadcast %cst_9 : f32 to vector<1x256xf32>
    %19 = arith.addf %17, %18 : vector<1x256xf32>
    %20 = math.floor %19 : vector<1x256xf32>
    %21 = arith.mulf %20, %20 : vector<1x256xf32>
    %22 = arith.addf %12, %21 : vector<1x256xf32>
    %23 = arith.mulf %2, %22 : vector<1x256xf32>
    %cst_10 = arith.constant dense<0.000000e+00> : vector<1xf32>
    %24 = vector.multi_reduction <add>, %23, %cst_10 [1] : vector<1x256xf32> to vector<1xf32>
    %25 = vector.shape_cast %24 : vector<1xf32> to vector<1x1xf32>
    %c0_11 = arith.constant 0 : index
    %c0_12 = arith.constant 0 : index
    %c0_13 = arith.constant 0 : index
    %c0_14 = arith.constant 0 : index
    %26 = vector.load %arg5[%c0_11, %c0_12, %c0_13, %c0_14] : memref<1x1x1x1xf32, #tpu.memory_space<vmem>>, vector<1x1x1x1xf32>
    %27 = vector.shape_cast %26 : vector<1x1x1x1xf32> to vector<1x1xf32>
    %28 = vector.shape_cast %25 : vector<1x1xf32> to vector<1x1x1x1xf32>
    tpu.vector_store %arg5[%c0_11, %c0_12, %c0_13, %c0_14], %28 {strides = array<i32>} : memref<1x1x1x1xf32, #tpu.memory_space<vmem>>, vector<1x1x1x1xf32>,
    return
  }
  func.func @transform_0(%arg0: i32, %arg1: i32) -> (i32, i32, i32) {
    %c4_i32 = arith.constant 4 : i32
    %0 = arith.muli %arg0, %c4_i32 : i32
    %1 = arith.addi %0, %arg1 : i32
    %c0_i32 = arith.constant 0 : i32
    %c0_i32_0 = arith.constant 0 : i32
    %c0_i32_1 = arith.constant 0 : i32
    return %1, %c0_i32, %c0_i32_0 : i32, i32, i32
  }
  func.func @transform_1(%arg0: i32, %arg1: i32) -> (i32, i32, i32) {
    %c4_i32 = arith.constant 4 : i32
    %0 = arith.muli %arg0, %c4_i32 : i32
    %1 = arith.addi %0, %arg1 : i32
    %c0_i32 = arith.constant 0 : i32
    %c0_i32_0 = arith.constant 0 : i32
    %c0_i32_1 = arith.constant 0 : i32
    return %1, %c0_i32, %c0_i32_0 : i32, i32, i32
  }
  func.func @transform_2(%arg0: i32, %arg1: i32) -> (i32, i32) {
    %c0_i32 = arith.constant 0 : i32
    %c0_i32_0 = arith.constant 0 : i32
    %c0_i32_1 = arith.constant 0 : i32
    return %c0_i32, %c0_i32_0 : i32, i32
  }
  func.func @transform_3(%arg0: i32, %arg1: i32) -> (i32, i32, i32, i32) {
    %c0_i32 = arith.constant 0 : i32
    %c0_i32_0 = arith.constant 0 : i32
    %c0_i32_1 = arith.constant 0 : i32
    return %arg0, %arg1, %c0_i32, %c0_i32_0 : i32, i32, i32, i32
  }
}

module attributes {stable_mosaic.version = 11 : i64} {
  func.func @_hd_kernel(%arg0: i32, %arg1: i32, %arg2: memref<1x3x256xf32, #tpu.memory_space<vmem>>, %arg3: memref<1x256x2xf32, #tpu.memory_space<vmem>>, %arg4: memref<256x256xf32, #tpu.memory_space<vmem>>, %arg5: memref<1x1x1x1xf32, #tpu.memory_space<vmem>>) attributes {dimension_semantics = [#tpu.dimension_semantics<parallel>, #tpu.dimension_semantics<parallel>], iteration_bounds = array<i64: 2, 4>, scalar_prefetch = 0 : i64, scratch_operands = 0 : i64, tpu.core_type = #tpu.core_type<tc>, window_params = [{transform_indices = @transform_0, window_bounds = array<i64: 1, 3, 256>}, {transform_indices = @transform_1, window_bounds = array<i64: 1, 256, 2>}, {pipeline_mode = #tpu.pipeline_mode<synchronous>, transform_indices = @transform_2, window_bounds = array<i64: 256, 256>}, {transform_indices = @transform_3, window_bounds = array<i64: 1, 1, 1, 1>}]} {
    %c0 = arith.constant 0 : index
    %c0_0 = arith.constant 0 : index
    %c0_1 = arith.constant 0 : index
    %0 = vector.load %arg2[%c0, %c0_0, %c0_1] : memref<1x3x256xf32, #tpu.memory_space<vmem>>, vector<1x3x256xf32>
    %1 = vector.shape_cast %0 : vector<1x3x256xf32> to vector<3x256xf32>
    %2 = vector.extract_strided_slice %1 {offsets = [0, 0], sizes = [1, 256], strides = [1, 1]} : vector<3x256xf32> to vector<1x256xf32>
    %3 = vector.extract_strided_slice %1 {offsets = [1, 0], sizes = [1, 256], strides = [1, 1]} : vector<3x256xf32> to vector<1x256xf32>
    %4 = vector.extract_strided_slice %1 {offsets = [2, 0], sizes = [1, 256], strides = [1, 1]} : vector<3x256xf32> to vector<1x256xf32>
    %cst = arith.constant 1.000000e+30 : f32
    %5 = vector.broadcast %cst : f32 to vector<1x256xf32>
    %cst_2 = arith.constant 1.000000e+30 : f32
    %6 = vector.broadcast %cst_2 : f32 to vector<1x256xf32>
    %cst_3 = arith.constant 1.000000e+30 : f32
    %c0_i32 = arith.constant 0 : i32
    %c2_i32 = arith.constant 2 : i32
    %7 = arith.addi %c0_i32, %c2_i32 : i32
    %c1_i32 = arith.constant 1 : i32
    %8:2 = scf.for %arg6 = %c0_i32 to %7 step %c1_i32 iter_args(%arg7 = %5, %arg8 = %6) -> (vector<1x256xf32>, vector<1x256xf32>)  : i32 {
      %c128_i32 = arith.constant 128 : i32
      %29 = arith.muli %arg6, %c128_i32 : i32
      %30 = tpu.assume_multiple %29, 128 : i32
      %31 = arith.index_cast %30 : i32 to index
      %c0_15 = arith.constant 0 : index
      %32 = vector.load %arg4[%31, %c0_15] : memref<256x256xf32, #tpu.memory_space<vmem>>, vector<128x256xf32>
      %c0_16 = arith.constant 0 : index
      %33 = arith.index_cast %30 : i32 to index
      %c0_17 = arith.constant 0 : index
      %34 = vector.load %arg3[%c0_16, %33, %c0_17] : memref<1x256x2xf32, #tpu.memory_space<vmem>>, vector<1x128x2xf32>
      %35 = vector.shape_cast %34 : vector<1x128x2xf32> to vector<128x2xf32>
      %36 = vector.extract_strided_slice %35 {offsets = [0, 0], sizes = [128, 1], strides = [1, 1]} : vector<128x2xf32> to vector<128x1xf32>
      %37 = vector.extract_strided_slice %35 {offsets = [0, 1], sizes = [128, 1], strides = [1, 1]} : vector<128x2xf32> to vector<128x1xf32>
      %38 = vector.broadcast %36 : vector<128x1xf32> to vector<128x256xf32>
      %39 = vector.broadcast %3 : vector<1x256xf32> to vector<128x256xf32>
      %40 = arith.cmpf one, %38, %39 : vector<128x256xf32>
      %41 = vector.broadcast %cst_3 : f32 to vector<128x256xf32>
      %42 = arith.select %40, %32, %41 : vector<128x256xi1>, vector<128x256xf32>
      %cst_18 = arith.constant dense<0x7F800000> : vector<256xf32>
      %43 = vector.multi_reduction <minimumf>, %42, %cst_18 [0] : vector<128x256xf32> to vector<256xf32>
      %44 = vector.shape_cast %43 : vector<256xf32> to vector<1x256xf32>
      %45 = vector.broadcast %37 : vector<128x1xf32> to vector<128x256xf32>
      %46 = vector.broadcast %4 : vector<1x256xf32> to vector<128x256xf32>
      %47 = arith.cmpf one, %45, %46 : vector<128x256xf32>
      %48 = vector.broadcast %cst_3 : f32 to vector<128x256xf32>
      %49 = arith.select %47, %32, %48 : vector<128x256xi1>, vector<128x256xf32>
      %cst_19 = arith.constant dense<0x7F800000> : vector<256xf32>
      %50 = vector.multi_reduction <minimumf>, %49, %cst_19 [0] : vector<128x256xf32> to vector<256xf32>
      %51 = vector.shape_cast %50 : vector<256xf32> to vector<1x256xf32>
      %52 = arith.minimumf %arg7, %44 : vector<1x256xf32>
      %53 = arith.minimumf %arg8, %51 : vector<1x256xf32>
      scf.yield %52, %53 : vector<1x256xf32>, vector<1x256xf32>
    }
    %c2_i32_4 = arith.constant 2 : i32
    %cst_5 = arith.constant 5.000000e+29 : f32
    %9 = vector.broadcast %cst_5 : f32 to vector<1x256xf32>
    %10 = arith.cmpf ogt, %8#1, %9 : vector<1x256xf32>
    %cst_6 = arith.constant 0.000000e+00 : f32
    %11 = vector.broadcast %cst_6 : f32 to vector<1x256xf32>
    %12 = arith.select %10, %11, %8#1 : vector<1x256xi1>, vector<1x256xf32>
    %cst_7 = arith.constant 5.000000e+29 : f32
    %13 = vector.broadcast %cst_7 : f32 to vector<1x256xf32>
    %14 = arith.cmpf ogt, %8#0, %13 : vector<1x256xf32>
    %cst_8 = arith.constant 0.000000e+00 : f32
    %15 = vector.broadcast %cst_8 : f32 to vector<1x256xf32>
    %16 = arith.select %14, %15, %8#0 : vector<1x256xi1>, vector<1x256xf32>
    %17 = math.sqrt %16 : vector<1x256xf32>
    %cst_9 = arith.constant 9.99999974E-5 : f32
    %18 = vector.broadcast %cst_9 : f32 to vector<1x256xf32>
    %19 = arith.addf %17, %18 : vector<1x256xf32>
    %20 = math.floor %19 : vector<1x256xf32>
    %21 = arith.mulf %20, %20 : vector<1x256xf32>
    %22 = arith.addf %12, %21 : vector<1x256xf32>
    %23 = arith.mulf %2, %22 : vector<1x256xf32>
    %cst_10 = arith.constant dense<0.000000e+00> : vector<1xf32>
    %24 = vector.multi_reduction <add>, %23, %cst_10 [1] : vector<1x256xf32> to vector<1xf32>
    %25 = vector.shape_cast %24 : vector<1xf32> to vector<1x1xf32>
    %c0_11 = arith.constant 0 : index
    %c0_12 = arith.constant 0 : index
    %c0_13 = arith.constant 0 : index
    %c0_14 = arith.constant 0 : index
    %26 = vector.load %arg5[%c0_11, %c0_12, %c0_13, %c0_14] : memref<1x1x1x1xf32, #tpu.memory_space<vmem>>, vector<1x1x1x1xf32>
    %27 = vector.shape_cast %26 : vector<1x1x1x1xf32> to vector<1x1xf32>
    %28 = vector.shape_cast %25 : vector<1x1xf32> to vector<1x1x1x1xf32>
    tpu.vector_store %arg5[%c0_11, %c0_12, %c0_13, %c0_14], %28 {strides = array<i32>} : memref<1x1x1x1xf32, #tpu.memory_space<vmem>>, vector<1x1x1x1xf32>,
    return
  }
  func.func @transform_0(%arg0: i32, %arg1: i32) -> (i32, i32, i32) {
    %c4_i32 = arith.constant 4 : i32
    %0 = arith.muli %arg0, %c4_i32 : i32
    %1 = arith.addi %0, %arg1 : i32
    %c0_i32 = arith.constant 0 : i32
    %c0_i32_0 = arith.constant 0 : i32
    %c0_i32_1 = arith.constant 0 : i32
    return %1, %c0_i32, %c0_i32_0 : i32, i32, i32
  }
  func.func @transform_1(%arg0: i32, %arg1: i32) -> (i32, i32, i32) {
    %c4_i32 = arith.constant 4 : i32
    %0 = arith.muli %arg0, %c4_i32 : i32
    %1 = arith.addi %0, %arg1 : i32
    %c0_i32 = arith.constant 0 : i32
    %c0_i32_0 = arith.constant 0 : i32
    %c0_i32_1 = arith.constant 0 : i32
    return %1, %c0_i32, %c0_i32_0 : i32, i32, i32
  }
  func.func @transform_2(%arg0: i32, %arg1: i32) -> (i32, i32) {
    %c0_i32 = arith.constant 0 : i32
    %c0_i32_0 = arith.constant 0 : i32
    %c0_i32_1 = arith.constant 0 : i32
    return %c0_i32, %c0_i32_0 : i32, i32
  }
  func.func @transform_3(%arg0: i32, %arg1: i32) -> (i32, i32, i32, i32) {
    %c0_i32 = arith.constant 0 : i32
    %c0_i32_0 = arith.constant 0 : i32
    %c0_i32_1 = arith.constant 0 : i32
    return %arg0, %arg1, %c0_i32, %c0_i32_0 : i32, i32, i32, i32
  }
}

</mosaic_0001>

<llo_original>
// kernel: tpu_custom_call.1
$region0: #{tpu_custom_call.1}
  #allocation0 [shape = 'u32[]', space=smem, size = 0x4, offset = 0x4, fixed_abs, tag = 'smem constant byte address 0x4 - core index']
  #allocation1 [shape = 'u32[72,128]{1,0:T(1,128)}', space=vmem, size = 0x9000, scoped, tag = 'internal scratch']
  %s0 = inlined_call_operand.vmem [shape: f32[8,3,256], index: 0, kind: input, shape index: {}]
  %s1 = inlined_call_operand.vmem [shape: f32[8,256,2], index: 1, kind: input, shape index: {}]
  %s2 = inlined_call_operand.vmem [shape: f32[256,256], index: 2, kind: input, shape index: {}]
  %s3 = inlined_call_operand.vmem [shape: f32[2,4,1,1], index: 3, kind: output, shape index: {}]
  %s4 = sld [smem:[#allocation0]]
  $region52: #{tpu_custom_call.1} parent=0
    _
  %s6 = ssub.s32 1, %s4
  %s7 = scalar_select 0, %s6, %s4
  loop: start=0, step=1, limit=10
  $region2: #{tpu_custom_call.1} parent=0 // loop_pre_header
    _
  $region3: #{tpu_custom_call.1} parent=0 // loop_header
    %s9 = sphi 0, %s13
    %p10 = scmp.ge.s32.totalorder %s9, 10
    %s16 = sphi 0, %s28
    %s17 = sphi 0, %s24
    %s18 = sphi 0, %s16
    %s19 = sphi 0, %s17
    %s20 = sphi 0, %s18
    %s21 = sphi 0, %s19
    %s35 = sphi 0, %s37
    %s38 = sphi 0, %s35
    %s39 = sphi 0, %s38
    %s55 = sphi 0, %s39
    %s65 = sphi 0, %s67
    %s68 = sphi 0, %s65
    %s69 = sphi 0, %s68
    %s85 = sphi 0, %s69
    %s89 = sphi 0, %s89
    %s91 = sphi 0, %s89
    %s92 = sphi 0, %s91
    %s106 = sphi 0, %s92
    %s114 = sphi 0, %s116
    %s117 = sphi 0, %s114
    %s118 = sphi 0, %s117
    %s134 = sphi 0, %s118
  $region4: #{tpu_custom_call.1} parent=0 // loop_header_branch
    %12 = sbr.rel (%p10) target = $region8
  $region5: #{tpu_custom_call.1} parent=0 // loop_body
    %s14 = ssub.s32 %s9, 1
    %s15 = ssub.s32 %s9, 2
    %s22 = sadd.s32 1, %s17
    %p23 = scmp.ge.s32.totalorder %s22, 4
    %s24 = scalar_select %p23, 0, %s22
    %s25 = sadd.s32 1, %s16
    %s26 = scalar_select %p23, %s25, %s16
    %p27 = scmp.ge.s32.totalorder %s26, 2
    %s28 = scalar_select %p27, 0, %s26
    %s29 = smul.u32 %s16, 4
    %s30 = sadd.s32 %s29, %s17
    %s31 = smul.u32 %s28, 4
    %s32 = sadd.s32 %s31, %s24
    %s33 = ssub.s32 %s30, %s32
    %p34 = scmp.eq.s32.totalorder %s33, 0
    %s36 = sadd.s32 %s35, 1
    %s37 = scalar_select %p34, %s35, %s36
    %p40 = pneg %p34
    %p41 = scmp.eq.s32.totalorder %s9, 7
    %p42 = por %p40, %p41
    %p43 = scmp.ne.s32.totalorder %s35, %s38
    %p44 = scmp.eq.s32.totalorder %s9, 0
    %p45 = por %p43, %p44
    %p46 = scmp.ne.s32.totalorder %s35, %s38
    %p47 = scmp.eq.s32.totalorder %s14, 7
    %p48 = por %p46, %p47
    %p49 = scmp.ne.s32.totalorder %s38, %s39
    %p50 = scmp.eq.s32.totalorder %s14, 0
    %p51 = por %p49, %p50
    %p52 = scmp.ne.s32.totalorder %s38, %s39
    %p53 = scmp.eq.s32.totalorder %s15, 7
    %p54 = por %p52, %p53
    %p56 = scmp.ne.s32.totalorder %s39, %s55
    %p57 = scmp.eq.s32.totalorder %s15, 0
    %p58 = por %p56, %p57
    %s59 = smul.u32 %s16, 4
    %s60 = sadd.s32 %s59, %s17
    %s61 = smul.u32 %s28, 4
    %s62 = sadd.s32 %s61, %s24
    %s63 = ssub.s32 %s60, %s62
    %p64 = scmp.eq.s32.totalorder %s63, 0
    %s66 = sadd.s32 %s65, 1
    %s67 = scalar_select %p64, %s65, %s66
    %p70 = pneg %p64
    %p71 = scmp.eq.s32.totalorder %s9, 7
    %p72 = por %p70, %p71
    %p73 = scmp.ne.s32.totalorder %s65, %s68
    %p74 = scmp.eq.s32.totalorder %s9, 0
    %p75 = por %p73, %p74
    %p76 = scmp.ne.s32.totalorder %s65, %s68
    %p77 = scmp.eq.s32.totalorder %s14, 7
    %p78 = por %p76, %p77
    %p79 = scmp.ne.s32.totalorder %s68, %s69
    %p80 = scmp.eq.s32.totalorder %s14, 0
    %p81 = por %p79, %p80
    %p82 = scmp.ne.s32.totalorder %s68, %s69
    %p83 = scmp.eq.s32.totalorder %s15, 7
    %p84 = por %p82, %p83
    %p86 = scmp.ne.s32.totalorder %s69, %s85
    %p87 = scmp.eq.s32.totalorder %s15, 0
    %p88 = por %p86, %p87
    %s90 = sadd.s32 %s89, 1
    %p93 = scmp.eq.s32.totalorder %s9, 7
    %p94 = scmp.ne.s32.totalorder %s89, %s91
    %p95 = scmp.eq.s32.totalorder %s9, 0
    %p96 = por %p94, %p95
    %p97 = scmp.ne.s32.totalorder %s89, %s91
    %p98 = scmp.eq.s32.totalorder %s14, 7
    %p99 = por %p97, %p98
    %p100 = scmp.ne.s32.totalorder %s91, %s92
    %p101 = scmp.eq.s32.totalorder %s14, 0
    %p102 = por %p100, %p101
    %p103 = scmp.ne.s32.totalorder %s91, %s92
    %p104 = scmp.eq.s32.totalorder %s15, 7
    %p105 = por %p103, %p104
    %p107 = scmp.ne.s32.totalorder %s92, %s106
    %p108 = scmp.eq.s32.totalorder %s15, 0
    %p109 = por %p107, %p108
    %s110 = ssub.s32 %s16, %s28
    %s111 = ssub.s32 %s17, %s24
    %s112 = sor.u32 %s110, %s111
    %p113 = scmp.eq.s32.totalorder %s112, 0
    %s115 = sadd.s32 %s114, 1
    %s116 = scalar_select %p113, %s114, %s115
    %p119 = pneg %p113
    %p120 = scmp.eq.s32.totalorder %s9, 7
    %p121 = por %p119, %p120
    %p122 = scmp.ne.s32.totalorder %s114, %s117
    %p123 = scmp.eq.s32.totalorder %s9, 0
    %p124 = por %p122, %p123
    %p125 = scmp.ne.s32.totalorder %s114, %s117
    %p126 = scmp.eq.s32.totalorder %s14, 7
    %p127 = por %p125, %p126
    %p128 = scmp.ne.s32.totalorder %s117, %s118
    %p129 = scmp.eq.s32.totalorder %s14, 0
    %p130 = por %p128, %p129
    %p131 = scmp.ne.s32.totalorder %s117, %s118
    %p132 = scmp.eq.s32.totalorder %s15, 7
    %p133 = por %p131, %p132
    %p135 = scmp.ne.s32.totalorder %s118, %s134
    %p136 = scmp.eq.s32.totalorder %s15, 0
    %p137 = por %p135, %p136
    %p138 = scmp.le.s32.totalorder 1, %s9
    %p139 = scmp.lt.s32.totalorder %s9, 9
    %p140 = pnand %p138, %p139
    %p141 = pneg %p140
    // Predicated region
    $region9: #{tpu_custom_call.1} parent=5 // pred_check
      _
    $region10: #{tpu_custom_call.1} parent=5 // pred_check_branch
      %143 = sbr.rel (%p140) target = $region12
    $region11: #{tpu_custom_call.1} parent=5 // pred_region
      %s144 = ssub.s32 %s9, 1
      // Predicated region
      $region13: #{tpu_custom_call.1} parent=11 // pred_check
        %p145 = pneg %p102
      $region14: #{tpu_custom_call.1} parent=11 // pred_check_branch
        %147 = sbr.rel (%p145) target = $region16
      $region15: #{tpu_custom_call.1} parent=11 // pred_region
        _
      $region16: #{tpu_custom_call.1} parent=11 // pred_fallthru
        _
    $region12: #{tpu_custom_call.1} parent=5 // pred_fallthru
      _
    %p148 = scmp.lt.s32.totalorder %s9, 8
    // Predicated region
    $region17: #{tpu_custom_call.1} parent=5 // pred_check
      %p149 = pneg %p148
    $region18: #{tpu_custom_call.1} parent=5 // pred_check_branch
      %151 = sbr.rel (%p149) target = $region20
    $region19: #{tpu_custom_call.1} parent=5 // pred_region
      // Predicated region
      $region21: #{tpu_custom_call.1} parent=19 // pred_check
        %p152 = pneg %p45
      $region22: #{tpu_custom_call.1} parent=19 // pred_check_branch
        %154 = sbr.rel (%p152) target = $region24
      $region23: #{tpu_custom_call.1} parent=19 // pred_region
        %s155 = smul.u32 %s16, 4
        %s156 = sadd.s32 %s155, %s17
        %p157 = scmp.lt.s32.totalorder %s156, 7
        %s158 = scalar_select %p157, %s156, 7
        %s159 = smul.addr %s158, 2
        %s160 = smul.addr %s159, 4
        %s161 = scalar_lea.vmem %s0, %s160
        %s162 = smul.u32 %s16, 4
        %s163 = sadd.s32 %s162, %s17
      $region24: #{tpu_custom_call.1} parent=19 // pred_fallthru
        _
      // Predicated region
      $region25: #{tpu_custom_call.1} parent=19 // pred_check
        %p164 = pneg %p75
      $region26: #{tpu_custom_call.1} parent=19 // pred_check_branch
        %166 = sbr.rel (%p164) target = $region28
      $region27: #{tpu_custom_call.1} parent=19 // pred_region
        %s167 = smul.u32 %s16, 4
        %s168 = sadd.s32 %s167, %s17
        %p169 = scmp.lt.s32.totalorder %s168, 7
        %s170 = scalar_select %p169, %s168, 7
        %s171 = smul.addr %s170, 32
        %s172 = smul.addr %s171, 8
        %s173 = scalar_lea.vmem %s1, %s172
        %s174 = smul.u32 %s16, 4
        %s175 = sadd.s32 %s174, %s17
      $region28: #{tpu_custom_call.1} parent=19 // pred_fallthru
        _
    $region20: #{tpu_custom_call.1} parent=5 // pred_fallthru
      _
    %p176 = scmp.le.s32.totalorder 1, %s9
    %p177 = scmp.lt.s32.totalorder %s9, 9
    %p178 = pnand %p176, %p177
    %p179 = pneg %p178
    // Predicated region
    $region29: #{tpu_custom_call.1} parent=5 // pred_check
      _
    $region30: #{tpu_custom_call.1} parent=5 // pred_check_branch
      %181 = sbr.rel (%p178) target = $region32
    $region31: #{tpu_custom_call.1} parent=5 // pred_region
      %s182 = ssub.s32 %s9, 1
      %s183 = smul.u32 %s18, 4
      %s184 = sadd.s32 %s183, %s19
      %p185 = scmp.lt.s32.totalorder %s184, 7
      %s186 = scalar_select %p185, %s184, 7
      %s187 = smul.addr %s186, 2
      %s188 = smul.addr %s187, 4
      %s189 = scalar_lea.vmem %s0, %s188
      %p190 = pneg %p51
      %p191 = pneg %p48
      %s192 = smul.u32 %s18, 4
      %s193 = sadd.s32 %s192, %s19
      %p194 = scmp.lt.s32.totalorder %s193, 7
      %s195 = scalar_select %p194, %s193, 7
      %s196 = smul.addr %s195, 32
      %s197 = smul.addr %s196, 8
      %s198 = scalar_lea.vmem %s1, %s197
      %p199 = pneg %p81
      %p200 = pneg %p78
      %p201 = pneg %p102
      %p202 = pneg %p99
      %p203 = pneg %p130
      %p204 = pneg %p127
      %p205 = scmp.lt.s32.totalorder %s18, 1
      %s206 = scalar_select %p205, %s18, 1
      %p207 = scmp.lt.s32.totalorder %s19, 3
      %s208 = scalar_select %p207, %s19, 3
      %s209 = smul.addr %s206, 4
      %s210 = sadd.s32 %s208, %s209
      %s211 = scalar_lea.vmem %s3, %s210
      %s212 = smul.u32 %s18, 4
      %s213 = sadd.s32 %s212, %s19
      %p214 = scmp.lt.s32.totalorder %s213, 7
      %s215 = scalar_select %p214, %s213, 7
      %s216 = smul.addr %s215, 2
      %s217 = smul.addr %s216, 4
      %s218 = scalar_lea.vmem %s0, %s217
      %s219 = smul.u32 %s18, 4
      %s220 = sadd.s32 %s219, %s19
      %s221 = smul.u32 %s18, 4
      %s222 = sadd.s32 %s221, %s19
      %p223 = scmp.lt.s32.totalorder %s222, 7
      %s224 = scalar_select %p223, %s222, 7
      %s225 = smul.addr %s224, 32
      %s226 = smul.addr %s225, 8
      %s227 = scalar_lea.vmem %s1, %s226
      %s228 = smul.u32 %s18, 4
      %s229 = sadd.s32 %s228, %s19
      %p230 = scmp.lt.s32.totalorder %s18, 1
      %s231 = scalar_select %p230, %s18, 1
      %p232 = scmp.lt.s32.totalorder %s19, 3
      %s233 = scalar_select %p232, %s19, 3
      %s234 = smul.addr %s231, 4
      %s235 = sadd.s32 %s233, %s234
      %s236 = scalar_lea.vmem %s3, %s235
      %v237 = vld [vmem:[%s218] sm:$0x77]
      loop: start=0, step=1, limit=2
      $region33: #{tpu_custom_call.1} parent=31 // loop_pre_header
        _
      $region34: #{tpu_custom_call.1} parent=31 // loop_header
        %s239 = sphi 0, %s243
        %p240 = scmp.ge.s32.totalorder %s239, 2
        %v244 = vphi 1e+30, %v672
        %v245 = vphi 1e+30, %v673
        %v246 = vphi 1e+30, %v674
        %v247 = vphi 1e+30, %v675
      $region35: #{tpu_custom_call.1} parent=31 // loop_header_branch
        %242 = sbr.rel (%p240) target = $region39
      $region36: #{tpu_custom_call.1} parent=31 // loop_body
        %s248 = smul.u32 %s239, 128
        %s249 = sshra.s32 %s248, 3
        %s250 = sand.u32 %s248, 7
        %s251 = smul.u32 %s249, 2
        %s252 = smul.addr %s251, 8
        %s253 = scalar_lea.vmem %s2, %s252
        %v254 = vld [vmem:[%s253] sm:$0xff]
        %v255 = vld [vmem:[%s253 + $0x8] sm:$0xff]
        %v256 = vld [vmem:[%s253 + $0x10] sm:$0xff]
        %v257 = vld [vmem:[%s253 + $0x18] sm:$0xff]
        %v258 = vld [vmem:[%s253 + $0x20] sm:$0xff]
        %v259 = vld [vmem:[%s253 + $0x28] sm:$0xff]
        %v260 = vld [vmem:[%s253 + $0x30] sm:$0xff]
        %v261 = vld [vmem:[%s253 + $0x38] sm:$0xff]
        %v262 = vld [vmem:[%s253 + $0x40] sm:$0xff]
        %v263 = vld [vmem:[%s253 + $0x48] sm:$0xff]
        %v264 = vld [vmem:[%s253 + $0x50] sm:$0xff]
        %v265 = vld [vmem:[%s253 + $0x58] sm:$0xff]
        %v266 = vld [vmem:[%s253 + $0x60] sm:$0xff]
        %v267 = vld [vmem:[%s253 + $0x68] sm:$0xff]
        %v268 = vld [vmem:[%s253 + $0x70] sm:$0xff]
        %v269 = vld [vmem:[%s253 + $0x78] sm:$0xff]
        %v270 = vld [vmem:[%s253 + $0x80] sm:$0xff]
        %v271 = vld [vmem:[%s253 + $0x88] sm:$0xff]
        %v272 = vld [vmem:[%s253 + $0x90] sm:$0xff]
        %v273 = vld [vmem:[%s253 + $0x98] sm:$0xff]
        %v274 = vld [vmem:[%s253 + $0xa0] sm:$0xff]
        %v275 = vld [vmem:[%s253 + $0xa8] sm:$0xff]
        %v276 = vld [vmem:[%s253 + $0xb0] sm:$0xff]
        %v277 = vld [vmem:[%s253 + $0xb8] sm:$0xff]
        %v278 = vld [vmem:[%s253 + $0xc0] sm:$0xff]
        %v279 = vld [vmem:[%s253 + $0xc8] sm:$0xff]
        %v280 = vld [vmem:[%s253 + $0xd0] sm:$0xff]
        %v281 = vld [vmem:[%s253 + $0xd8] sm:$0xff]
        %v282 = vld [vmem:[%s253 + $0xe0] sm:$0xff]
        %v283 = vld [vmem:[%s253 + $0xe8] sm:$0xff]
        %v284 = vld [vmem:[%s253 + $0xf0] sm:$0xff]
        %v285 = vld [vmem:[%s253 + $0xf8] sm:$0xff]
        %s286 = scalar_lea.vmem %s227, %s248
        %v287 = vld [vmem:[%s286] sm:$0xff]
        %v288 = vld [vmem:[%s286 + $0x8] sm:$0xff]
        %v289 = vld [vmem:[%s286 + $0x10] sm:$0xff]
        %v290 = vld [vmem:[%s286 + $0x18] sm:$0xff]
        %v291 = vld [vmem:[%s286 + $0x20] sm:$0xff]
        %v292 = vld [vmem:[%s286 + $0x28] sm:$0xff]
        %v293 = vld [vmem:[%s286 + $0x30] sm:$0xff]
        %v294 = vld [vmem:[%s286 + $0x38] sm:$0xff]
        %v295 = vld [vmem:[%s286 + $0x40] sm:$0xff]
        %v296 = vld [vmem:[%s286 + $0x48] sm:$0xff]
        %v297 = vld [vmem:[%s286 + $0x50] sm:$0xff]
        %v298 = vld [vmem:[%s286 + $0x58] sm:$0xff]
        %v299 = vld [vmem:[%s286 + $0x60] sm:$0xff]
        %v300 = vld [vmem:[%s286 + $0x68] sm:$0xff]
        %v301 = vld [vmem:[%s286 + $0x70] sm:$0xff]
        %v302 = vld [vmem:[%s286 + $0x78] sm:$0xff]
        %304 = vset.pattern.permute.xlu0 0
        %305 = vperm.xlu0 %304, %v287
        %v306 = vpop.permute.xlu0 %305
        %309 = vset.pattern.permute.xlu0 0
        %310 = vperm.xlu0 %309, %v288
        %v311 = vpop.permute.xlu0 %310
        %314 = vset.pattern.permute.xlu0 0
        %315 = vperm.xlu0 %314, %v289
        %v316 = vpop.permute.xlu0 %315
        %319 = vset.pattern.permute.xlu0 0
        %320 = vperm.xlu0 %319, %v290
        %v321 = vpop.permute.xlu0 %320
        %324 = vset.pattern.permute.xlu0 0
        %325 = vperm.xlu0 %324, %v291
        %v326 = vpop.permute.xlu0 %325
        %329 = vset.pattern.permute.xlu0 0
        %330 = vperm.xlu0 %329, %v292
        %v331 = vpop.permute.xlu0 %330
        %334 = vset.pattern.permute.xlu0 0
        %335 = vperm.xlu0 %334, %v293
        %v336 = vpop.permute.xlu0 %335
        %339 = vset.pattern.permute.xlu0 0
        %340 = vperm.xlu0 %339, %v294
        %v341 = vpop.permute.xlu0 %340
        %344 = vset.pattern.permute.xlu0 0
        %345 = vperm.xlu0 %344, %v295
        %v346 = vpop.permute.xlu0 %345
        %349 = vset.pattern.permute.xlu0 0
        %350 = vperm.xlu0 %349, %v296
        %v351 = vpop.permute.xlu0 %350
        %354 = vset.pattern.permute.xlu0 0
        %355 = vperm.xlu0 %354, %v297
        %v356 = vpop.permute.xlu0 %355
        %359 = vset.pattern.permute.xlu0 0
        %360 = vperm.xlu0 %359, %v298
        %v361 = vpop.permute.xlu0 %360
        %364 = vset.pattern.permute.xlu0 0
        %365 = vperm.xlu0 %364, %v299
        %v366 = vpop.permute.xlu0 %365
        %369 = vset.pattern.permute.xlu0 0
        %370 = vperm.xlu0 %369, %v300
        %v371 = vpop.permute.xlu0 %370
        %374 = vset.pattern.permute.xlu0 0
        %375 = vperm.xlu0 %374, %v301
        %v376 = vpop.permute.xlu0 %375
        %379 = vset.pattern.permute.xlu0 0
        %380 = vperm.xlu0 %379, %v302
        %v381 = vpop.permute.xlu0 %380
        %v384 = vperm.slane %v237, 1
        %v385 = vperm.slane %v237, 5
        %v388 = vperm.slane %v384, 1
        %v389 = vperm.slane %v385, 1
        %vm390 = vcmp.ne.f32.partialorder %v306, %v388
        %vm391 = vcmp.ne.f32.partialorder %v306, %v389
        %vm392 = vcmp.ne.f32.partialorder %v311, %v388
        %vm393 = vcmp.ne.f32.partialorder %v311, %v389
        %vm394 = vcmp.ne.f32.partialorder %v316, %v388
        %vm395 = vcmp.ne.f32.partialorder %v316, %v389
        %vm396 = vcmp.ne.f32.partialorder %v321, %v388
        %vm397 = vcmp.ne.f32.partialorder %v321, %v389
        %vm398 = vcmp.ne.f32.partialorder %v326, %v388
        %vm399 = vcmp.ne.f32.partialorder %v326, %v389
        %vm400 = vcmp.ne.f32.partialorder %v331, %v388
        %vm401 = vcmp.ne.f32.partialorder %v331, %v389
        %vm402 = vcmp.ne.f32.partialorder %v336, %v388
        %vm403 = vcmp.ne.f32.partialorder %v336, %v389
        %vm404 = vcmp.ne.f32.partialorder %v341, %v388
        %vm405 = vcmp.ne.f32.partialorder %v341, %v389
        %vm406 = vcmp.ne.f32.partialorder %v346, %v388
        %vm407 = vcmp.ne.f32.partialorder %v346, %v389
        %vm408 = vcmp.ne.f32.partialorder %v351, %v388
        %vm409 = vcmp.ne.f32.partialorder %v351, %v389
        %vm410 = vcmp.ne.f32.partialorder %v356, %v388
        %vm411 = vcmp.ne.f32.partialorder %v356, %v389
        %vm412 = vcmp.ne.f32.partialorder %v361, %v388
        %vm413 = vcmp.ne.f32.partialorder %v361, %v389
        %vm414 = vcmp.ne.f32.partialorder %v366, %v388
        %vm415 = vcmp.ne.f32.partialorder %v366, %v389
        %vm416 = vcmp.ne.f32.partialorder %v371, %v388
        %vm417 = vcmp.ne.f32.partialorder %v371, %v389
        %vm418 = vcmp.ne.f32.partialorder %v376, %v388
        %vm419 = vcmp.ne.f32.partialorder %v376, %v389
        %vm420 = vcmp.ne.f32.partialorder %v381, %v388
        %vm421 = vcmp.ne.f32.partialorder %v381, %v389
        %v422 = vsel %vm390, %v254, 1e+30
        %v423 = vsel %vm391, %v255, 1e+30
        %v424 = vsel %vm392, %v256, 1e+30
        %v425 = vsel %vm393, %v257, 1e+30
        %v426 = vsel %vm394, %v258, 1e+30
        %v427 = vsel %vm395, %v259, 1e+30
        %v428 = vsel %vm396, %v260, 1e+30
        %v429 = vsel %vm397, %v261, 1e+30
        %v430 = vsel %vm398, %v262, 1e+30
        %v431 = vsel %vm399, %v263, 1e+30
        %v432 = vsel %vm400, %v264, 1e+30
        %v433 = vsel %vm401, %v265, 1e+30
        %v434 = vsel %vm402, %v266, 1e+30
        %v435 = vsel %vm403, %v267, 1e+30
        %v436 = vsel %vm404, %v268, 1e+30
        %v437 = vsel %vm405, %v269, 1e+30
        %v438 = vsel %vm406, %v270, 1e+30
        %v439 = vsel %vm407, %v271, 1e+30
        %v440 = vsel %vm408, %v272, 1e+30
        %v441 = vsel %vm409, %v273, 1e+30
        %v442 = vsel %vm410, %v274, 1e+30
        %v443 = vsel %vm411, %v275, 1e+30
        %v444 = vsel %vm412, %v276, 1e+30
        %v445 = vsel %vm413, %v277, 1e+30
        %v446 = vsel %vm414, %v278, 1e+30
        %v447 = vsel %vm415, %v279, 1e+30
        %v448 = vsel %vm416, %v280, 1e+30
        %v449 = vsel %vm417, %v281, 1e+30
        %v450 = vsel %vm418, %v282, 1e+30
        %v451 = vsel %vm419, %v283, 1e+30
        %v452 = vsel %vm420, %v284, 1e+30
        %v453 = vsel %vm421, %v285, 1e+30
        %v454 = vmin.f32 %v422, %v426
        %v455 = vmin.f32 %v424, %v428
        %v456 = vmin.f32 %v454, %v430
        %v457 = vmin.f32 %v455, %v432
        %v458 = vmin.f32 %v456, %v434
        %v459 = vmin.f32 %v457, %v436
        %v460 = vmin.f32 %v458, %v438
        %v461 = vmin.f32 %v459, %v440
        %v462 = vmin.f32 %v460, %v442
        %v463 = vmin.f32 %v461, %v444
        %v464 = vmin.f32 %v462, %v446
        %v465 = vmin.f32 %v463, %v448
        %v466 = vmin.f32 %v464, %v450
        %v467 = vmin.f32 %v465, %v452
        %v468 = vmin.f32 %v466, %v467
        %v469 = vrot.slane %v468, 4
        %v470 = vmin.f32 %v468, %v469
        %v471 = vrot.slane %v470, 2
        %v472 = vmin.f32 %v470, %v471
        %v473 = vrot.slane %v472, 1
        %v474 = vmin.f32 %v472, %v473
        %v475 = vmin.f32 %v423, %v427
        %v476 = vmin.f32 %v425, %v429
        %v477 = vmin.f32 %v475, %v431
        %v478 = vmin.f32 %v476, %v433
        %v479 = vmin.f32 %v477, %v435
        %v480 = vmin.f32 %v478, %v437
        %v481 = vmin.f32 %v479, %v439
        %v482 = vmin.f32 %v480, %v441
        %v483 = vmin.f32 %v481, %v443
        %v484 = vmin.f32 %v482, %v445
        %v485 = vmin.f32 %v483, %v447
        %v486 = vmin.f32 %v484, %v449
        %v487 = vmin.f32 %v485, %v451
        %v488 = vmin.f32 %v486, %v453
        %v489 = vmin.f32 %v487, %v488
        %v490 = vrot.slane %v489, 4
        %v491 = vmin.f32 %v489, %v490
        %v492 = vrot.slane %v491, 2
        %v493 = vmin.f32 %v491, %v492
        %v494 = vrot.slane %v493, 1
        %v495 = vmin.f32 %v493, %v494
        %496 = vset.pattern.permute.xlu0 1
        %497 = vperm.xlu0 %496, %v287
        %v498 = vpop.permute.xlu0 %497
        %500 = vset.pattern.permute.xlu0 1
        %501 = vperm.xlu0 %500, %v288
        %v502 = vpop.permute.xlu0 %501
        %504 = vset.pattern.permute.xlu0 1
        %505 = vperm.xlu0 %504, %v289
        %v506 = vpop.permute.xlu0 %505
        %508 = vset.pattern.permute.xlu0 1
        %509 = vperm.xlu0 %508, %v290
        %v510 = vpop.permute.xlu0 %509
        %512 = vset.pattern.permute.xlu0 1
        %513 = vperm.xlu0 %512, %v291
        %v514 = vpop.permute.xlu0 %513
        %516 = vset.pattern.permute.xlu0 1
        %517 = vperm.xlu0 %516, %v292
        %v518 = vpop.permute.xlu0 %517
        %520 = vset.pattern.permute.xlu0 1
        %521 = vperm.xlu0 %520, %v293
        %v522 = vpop.permute.xlu0 %521
        %524 = vset.pattern.permute.xlu0 1
        %525 = vperm.xlu0 %524, %v294
        %v526 = vpop.permute.xlu0 %525
        %528 = vset.pattern.permute.xlu0 1
        %529 = vperm.xlu0 %528, %v295
        %v530 = vpop.permute.xlu0 %529
        %532 = vset.pattern.permute.xlu0 1
        %533 = vperm.xlu0 %532, %v296
        %v534 = vpop.permute.xlu0 %533
        %536 = vset.pattern.permute.xlu0 1
        %537 = vperm.xlu0 %536, %v297
        %v538 = vpop.permute.xlu0 %537
        %540 = vset.pattern.permute.xlu0 1
        %541 = vperm.xlu0 %540, %v298
        %v542 = vpop.permute.xlu0 %541
        %544 = vset.pattern.permute.xlu0 1
        %545 = vperm.xlu0 %544, %v299
        %v546 = vpop.permute.xlu0 %545
        %548 = vset.pattern.permute.xlu0 1
        %549 = vperm.xlu0 %548, %v300
        %v550 = vpop.permute.xlu0 %549
        %552 = vset.pattern.permute.xlu0 1
        %553 = vperm.xlu0 %552, %v301
        %v554 = vpop.permute.xlu0 %553
        %556 = vset.pattern.permute.xlu0 1
        %557 = vperm.xlu0 %556, %v302
        %v558 = vpop.permute.xlu0 %557
        %v560 = vperm.slane %v237, 2
        %v561 = vperm.slane %v237, 6
        %v564 = vperm.slane %v560, 2
        %v565 = vperm.slane %v561, 2
        %vm566 = vcmp.ne.f32.partialorder %v498, %v564
        %vm567 = vcmp.ne.f32.partialorder %v498, %v565
        %vm568 = vcmp.ne.f32.partialorder %v502, %v564
        %vm569 = vcmp.ne.f32.partialorder %v502, %v565
        %vm570 = vcmp.ne.f32.partialorder %v506, %v564
        %vm571 = vcmp.ne.f32.partialorder %v506, %v565
        %vm572 = vcmp.ne.f32.partialorder %v510, %v564
        %vm573 = vcmp.ne.f32.partialorder %v510, %v565
        %vm574 = vcmp.ne.f32.partialorder %v514, %v564
        %vm575 = vcmp.ne.f32.partialorder %v514, %v565
        %vm576 = vcmp.ne.f32.partialorder %v518, %v564
        %vm577 = vcmp.ne.f32.partialorder %v518, %v565
        %vm578 = vcmp.ne.f32.partialorder %v522, %v564
        %vm579 = vcmp.ne.f32.partialorder %v522, %v565
        %vm580 = vcmp.ne.f32.partialorder %v526, %v564
        %vm581 = vcmp.ne.f32.partialorder %v526, %v565
        %vm582 = vcmp.ne.f32.partialorder %v530, %v564
        %vm583 = vcmp.ne.f32.partialorder %v530, %v565
        %vm584 = vcmp.ne.f32.partialorder %v534, %v564
        %vm585 = vcmp.ne.f32.partialorder %v534, %v565
        %vm586 = vcmp.ne.f32.partialorder %v538, %v564
        %vm587 = vcmp.ne.f32.partialorder %v538, %v565
        %vm588 = vcmp.ne.f32.partialorder %v542, %v564
        %vm589 = vcmp.ne.f32.partialorder %v542, %v565
        %vm590 = vcmp.ne.f32.partialorder %v546, %v564
        %vm591 = vcmp.ne.f32.partialorder %v546, %v565
        %vm592 = vcmp.ne.f32.partialorder %v550, %v564
        %vm593 = vcmp.ne.f32.partialorder %v550, %v565
        %vm594 = vcmp.ne.f32.partialorder %v554, %v564
        %vm595 = vcmp.ne.f32.partialorder %v554, %v565
        %vm596 = vcmp.ne.f32.partialorder %v558, %v564
        %vm597 = vcmp.ne.f32.partialorder %v558, %v565
        %v598 = vsel %vm566, %v254, 1e+30
        %v599 = vsel %vm567, %v255, 1e+30
        %v600 = vsel %vm568, %v256, 1e+30
        %v601 = vsel %vm569, %v257, 1e+30
        %v602 = vsel %vm570, %v258, 1e+30
        %v603 = vsel %vm571, %v259, 1e+30
        %v604 = vsel %vm572, %v260, 1e+30
        %v605 = vsel %vm573, %v261, 1e+30
        %v606 = vsel %vm574, %v262, 1e+30
        %v607 = vsel %vm575, %v263, 1e+30
        %v608 = vsel %vm576, %v264, 1e+30
        %v609 = vsel %vm577, %v265, 1e+30
        %v610 = vsel %vm578, %v266, 1e+30
        %v611 = vsel %vm579, %v267, 1e+30
        %v612 = vsel %vm580, %v268, 1e+30
        %v613 = vsel %vm581, %v269, 1e+30
        %v614 = vsel %vm582, %v270, 1e+30
        %v615 = vsel %vm583, %v271, 1e+30
        %v616 = vsel %vm584, %v272, 1e+30
        %v617 = vsel %vm585, %v273, 1e+30
        %v618 = vsel %vm586, %v274, 1e+30
        %v619 = vsel %vm587, %v275, 1e+30
        %v620 = vsel %vm588, %v276, 1e+30
        %v621 = vsel %vm589, %v277, 1e+30
        %v622 = vsel %vm590, %v278, 1e+30
        %v623 = vsel %vm591, %v279, 1e+30
        %v624 = vsel %vm592, %v280, 1e+30
        %v625 = vsel %vm593, %v281, 1e+30
        %v626 = vsel %vm594, %v282, 1e+30
        %v627 = vsel %vm595, %v283, 1e+30
        %v628 = vsel %vm596, %v284, 1e+30
        %v629 = vsel %vm597, %v285, 1e+30
        %v630 = vmin.f32 %v598, %v602
        %v631 = vmin.f32 %v600, %v604
        %v632 = vmin.f32 %v630, %v606
        %v633 = vmin.f32 %v631, %v608
        %v634 = vmin.f32 %v632, %v610
        %v635 = vmin.f32 %v633, %v612
        %v636 = vmin.f32 %v634, %v614
        %v637 = vmin.f32 %v635, %v616
        %v638 = vmin.f32 %v636, %v618
        %v639 = vmin.f32 %v637, %v620
        %v640 = vmin.f32 %v638, %v622
        %v641 = vmin.f32 %v639, %v624
        %v642 = vmin.f32 %v640, %v626
        %v643 = vmin.f32 %v641, %v628
        %v644 = vmin.f32 %v642, %v643
        %v645 = vrot.slane %v644, 4
        %v646 = vmin.f32 %v644, %v645
        %v647 = vrot.slane %v646, 2
        %v648 = vmin.f32 %v646, %v647
        %v649 = vrot.slane %v648, 1
        %v650 = vmin.f32 %v648, %v649
        %v651 = vmin.f32 %v599, %v603
        %v652 = vmin.f32 %v601, %v605
        %v653 = vmin.f32 %v651, %v607
        %v654 = vmin.f32 %v652, %v609
        %v655 = vmin.f32 %v653, %v611
        %v656 = vmin.f32 %v654, %v613
        %v657 = vmin.f32 %v655, %v615
        %v658 = vmin.f32 %v656, %v617
        %v659 = vmin.f32 %v657, %v619
        %v660 = vmin.f32 %v658, %v621
        %v661 = vmin.f32 %v659, %v623
        %v662 = vmin.f32 %v660, %v625
        %v663 = vmin.f32 %v661, %v627
        %v664 = vmin.f32 %v662, %v629
        %v665 = vmin.f32 %v663, %v664
        %v666 = vrot.slane %v665, 4
        %v667 = vmin.f32 %v665, %v666
        %v668 = vrot.slane %v667, 2
        %v669 = vmin.f32 %v667, %v668
        %v670 = vrot.slane %v669, 1
        %v671 = vmin.f32 %v669, %v670
        %v672 = vmin.f32 %v244, %v474
        %v673 = vmin.f32 %v245, %v495
        %v674 = vmin.f32 %v246, %v650
        %v675 = vmin.f32 %v247, %v671
      $region37: #{tpu_custom_call.1} parent=31 // loop_footer
        %s243 = sadd.s32 1, %s239
      $region38: #{tpu_custom_call.1} parent=31 // loop_footer_branch
        %238 = sbr.rel target = $region34
      $region39: #{tpu_custom_call.1} parent=31 // loop_exit
        _
      %vm676 = vcmp.gt.f32.partialorder %v246, 5e+29
      %vm677 = vcmp.gt.f32.partialorder %v247, 5e+29
      %v678 = vsel %vm676, 0.0, %v246
      %v679 = vsel %vm677, 0.0, %v247
      %vm680 = vcmp.gt.f32.partialorder %v244, 5e+29
      %vm681 = vcmp.gt.f32.partialorder %v245, 5e+29
      %v682 = vsel %vm680, 0.0, %v244
      %v683 = vsel %vm681, 0.0, %v245
      %v684 = vrsqrt.pop %v682
      %v685 = vmul.f32 %v684, %v682
      %v686 = vmul.f32 %v685, %v684
      %v687 = vmul.f32 0.5, %v686
      %v688 = vsub.f32 1.5, %v687
      %v689 = vmul.f32 %v684, %v688
      %v690 = vmul.f32 %v682, %v689
      %vm691 = vcmp.eq.f32.partialorder %v682, inf
      %v692 = vsel %vm691, %v682, %v690
      %vm693 = vcmp.eq.f32.partialorder %v682, 0.0
      %v694 = vand.u32 %v682, 2147483648
      %v695 = vsel %vm693, %v694, %v692
      %v696 = vrsqrt.pop %v683
      %v697 = vmul.f32 %v696, %v683
      %v698 = vmul.f32 %v697, %v696
      %v699 = vmul.f32 0.5, %v698
      %v700 = vsub.f32 1.5, %v699
      %v701 = vmul.f32 %v696, %v700
      %v702 = vmul.f32 %v683, %v701
      %vm703 = vcmp.eq.f32.partialorder %v683, inf
      %v704 = vsel %vm703, %v683, %v702
      %vm705 = vcmp.eq.f32.partialorder %v683, 0.0
      %v706 = vand.u32 %v683, 2147483648
      %v707 = vsel %vm705, %v706, %v704
      %v708 = vadd.f32 %v695, 0.0001
      %v709 = vadd.f32 %v707, 0.0001
      %v710 = vfloor.f32 %v708
      %v711 = vfloor.f32 %v709
      %v712 = vmul.f32 %v710, %v710
      %v713 = vmul.f32 %v711, %v711
      %v714 = vadd.f32 %v678, %v712
      %v715 = vadd.f32 %v679, %v713
      %v718 = vrot.slane %v715, 4
      %vm719 = vcmask 1043456
      %v720 = vsel %vm719, %v714, %v718
      %v722 = vmul.f32 %v237, %v720
      %v724 = vperm.slane %v722, 0
      %v725 = vperm.slane %v722, 4
      %vm728 = vcmask 1040384
      %v729 = vsel %vm728, %v724, 0.0
      %v730 = vsel %vm728, %v725, 0.0
      %v731 = vadd.f32 %v729, %v730
      %732 = vadd.xlane.f32.xlu0 %v731
      %v733 = vpop.xlane.xlu0 %732
      %vm734 = vcmask 0
      %735 = vst.msk [vmem:[%s236] sm:$0x1] %vm734, %v733
      %p736 = scmp.lt.s32.totalorder %s18, 1
      %s737 = scalar_select %p736, %s18, 1
      %p738 = scmp.lt.s32.totalorder %s19, 3
      %s739 = scalar_select %p738, %s19, 3
      %s740 = smul.addr %s737, 4
      %s741 = sadd.s32 %s739, %s740
      %s742 = scalar_lea.vmem %s3, %s741
      // Predicated region
      $region40: #{tpu_custom_call.1} parent=31 // pred_check
        %p743 = pneg %p127
      $region41: #{tpu_custom_call.1} parent=31 // pred_check_branch
        %745 = sbr.rel (%p743) target = $region43
      $region42: #{tpu_custom_call.1} parent=31 // pred_region
        _
      $region43: #{tpu_custom_call.1} parent=31 // pred_fallthru
        _
    $region32: #{tpu_custom_call.1} parent=5 // pred_fallthru
      _
    %p746 = scmp.le.s32.totalorder 2, %s9
    // Predicated region
    $region44: #{tpu_custom_call.1} parent=5 // pred_check
      %p747 = pneg %p746
    $region45: #{tpu_custom_call.1} parent=5 // pred_check_branch
      %749 = sbr.rel (%p747) target = $region47
    $region46: #{tpu_custom_call.1} parent=5 // pred_region
      %s750 = ssub.s32 %s9, 2
      // Predicated region
      $region48: #{tpu_custom_call.1} parent=46 // pred_check
        %p751 = pneg %p133
      $region49: #{tpu_custom_call.1} parent=46 // pred_check_branch
        %753 = sbr.rel (%p751) target = $region51
      $region50: #{tpu_custom_call.1} parent=46 // pred_region
        %p754 = scmp.lt.s32.totalorder %s20, 1
        %s755 = scalar_select %p754, %s20, 1
        %p756 = scmp.lt.s32.totalorder %s21, 3
        %s757 = scalar_select %p756, %s21, 3
        %s758 = smul.addr %s755, 4
        %s759 = sadd.s32 %s757, %s758
        %s760 = scalar_lea.vmem %s3, %s759
      $region51: #{tpu_custom_call.1} parent=46 // pred_fallthru
        _
    $region47: #{tpu_custom_call.1} parent=5 // pred_fallthru
      _
  $region6: #{tpu_custom_call.1} parent=0 // loop_footer
    %s13 = sadd.s32 1, %s9
  $region7: #{tpu_custom_call.1} parent=0 // loop_footer_branch
    %8 = sbr.rel target = $region3
  $region8: #{tpu_custom_call.1} parent=0 // loop_exit
    _

// kernel: tpu_custom_call.1
$region0: #{tpu_custom_call.1}
  #allocation0 [shape = 'u32[]', space=smem, size = 0x4, offset = 0x4, fixed_abs, tag = 'smem constant byte address 0x4 - core index']
  #allocation1 [shape = 'u32[72,128]{1,0:T(1,128)}', space=vmem, size = 0x9000, scoped, tag = 'internal scratch']
  %s0 = inlined_call_operand.vmem [shape: f32[8,3,256], index: 0, kind: input, shape index: {}]
  %s1 = inlined_call_operand.vmem [shape: f32[8,256,2], index: 1, kind: input, shape index: {}]
  %s2 = inlined_call_operand.vmem [shape: f32[256,256], index: 2, kind: input, shape index: {}]
  %s3 = inlined_call_operand.vmem [shape: f32[2,4,1,1], index: 3, kind: output, shape index: {}]
  %s4 = sld [smem:[#allocation0]]
  $region52: #{tpu_custom_call.1} parent=0
    _
  %s6 = ssub.s32 1, %s4
  %s7 = scalar_select 0, %s6, %s4
  loop: start=0, step=1, limit=10
  $region2: #{tpu_custom_call.1} parent=0 // loop_pre_header
    _
  $region3: #{tpu_custom_call.1} parent=0 // loop_header
    %s9 = sphi 0, %s13
    %p10 = scmp.ge.s32.totalorder %s9, 10
    %s16 = sphi 0, %s28
    %s17 = sphi 0, %s24
    %s18 = sphi 0, %s16
    %s19 = sphi 0, %s17
    %s20 = sphi 0, %s18
    %s21 = sphi 0, %s19
    %s35 = sphi 0, %s37
    %s38 = sphi 0, %s35
    %s39 = sphi 0, %s38
    %s55 = sphi 0, %s39
    %s65 = sphi 0, %s67
    %s68 = sphi 0, %s65
    %s69 = sphi 0, %s68
    %s85 = sphi 0, %s69
    %s89 = sphi 0, %s89
    %s91 = sphi 0, %s89
    %s92 = sphi 0, %s91
    %s106 = sphi 0, %s92
    %s114 = sphi 0, %s116
    %s117 = sphi 0, %s114
    %s118 = sphi 0, %s117
    %s134 = sphi 0, %s118
  $region4: #{tpu_custom_call.1} parent=0 // loop_header_branch
    %12 = sbr.rel (%p10) target = $region8
  $region5: #{tpu_custom_call.1} parent=0 // loop_body
    %s14 = ssub.s32 %s9, 1
    %s15 = ssub.s32 %s9, 2
    %s22 = sadd.s32 1, %s17
    %p23 = scmp.ge.s32.totalorder %s22, 4
    %s24 = scalar_select %p23, 0, %s22
    %s25 = sadd.s32 1, %s16
    %s26 = scalar_select %p23, %s25, %s16
    %p27 = scmp.ge.s32.totalorder %s26, 2
    %s28 = scalar_select %p27, 0, %s26
    %s29 = smul.u32 %s16, 4
    %s30 = sadd.s32 %s29, %s17
    %s31 = smul.u32 %s28, 4
    %s32 = sadd.s32 %s31, %s24
    %s33 = ssub.s32 %s30, %s32
    %p34 = scmp.eq.s32.totalorder %s33, 0
    %s36 = sadd.s32 %s35, 1
    %s37 = scalar_select %p34, %s35, %s36
    %p40 = pneg %p34
    %p41 = scmp.eq.s32.totalorder %s9, 7
    %p42 = por %p40, %p41
    %p43 = scmp.ne.s32.totalorder %s35, %s38
    %p44 = scmp.eq.s32.totalorder %s9, 0
    %p45 = por %p43, %p44
    %p46 = scmp.ne.s32.totalorder %s35, %s38
    %p47 = scmp.eq.s32.totalorder %s14, 7
    %p48 = por %p46, %p47
    %p49 = scmp.ne.s32.totalorder %s38, %s39
    %p50 = scmp.eq.s32.totalorder %s14, 0
    %p51 = por %p49, %p50
    %p52 = scmp.ne.s32.totalorder %s38, %s39
    %p53 = scmp.eq.s32.totalorder %s15, 7
    %p54 = por %p52, %p53
    %p56 = scmp.ne.s32.totalorder %s39, %s55
    %p57 = scmp.eq.s32.totalorder %s15, 0
    %p58 = por %p56, %p57
    %s59 = smul.u32 %s16, 4
    %s60 = sadd.s32 %s59, %s17
    %s61 = smul.u32 %s28, 4
    %s62 = sadd.s32 %s61, %s24
    %s63 = ssub.s32 %s60, %s62
    %p64 = scmp.eq.s32.totalorder %s63, 0
    %s66 = sadd.s32 %s65, 1
    %s67 = scalar_select %p64, %s65, %s66
    %p70 = pneg %p64
    %p71 = scmp.eq.s32.totalorder %s9, 7
    %p72 = por %p70, %p71
    %p73 = scmp.ne.s32.totalorder %s65, %s68
    %p74 = scmp.eq.s32.totalorder %s9, 0
    %p75 = por %p73, %p74
    %p76 = scmp.ne.s32.totalorder %s65, %s68
    %p77 = scmp.eq.s32.totalorder %s14, 7
    %p78 = por %p76, %p77
    %p79 = scmp.ne.s32.totalorder %s68, %s69
    %p80 = scmp.eq.s32.totalorder %s14, 0
    %p81 = por %p79, %p80
    %p82 = scmp.ne.s32.totalorder %s68, %s69
    %p83 = scmp.eq.s32.totalorder %s15, 7
    %p84 = por %p82, %p83
    %p86 = scmp.ne.s32.totalorder %s69, %s85
    %p87 = scmp.eq.s32.totalorder %s15, 0
    %p88 = por %p86, %p87
    %s90 = sadd.s32 %s89, 1
    %p93 = scmp.eq.s32.totalorder %s9, 7
    %p94 = scmp.ne.s32.totalorder %s89, %s91
    %p95 = scmp.eq.s32.totalorder %s9, 0
    %p96 = por %p94, %p95
    %p97 = scmp.ne.s32.totalorder %s89, %s91
    %p98 = scmp.eq.s32.totalorder %s14, 7
    %p99 = por %p97, %p98
    %p100 = scmp.ne.s32.totalorder %s91, %s92
    %p101 = scmp.eq.s32.totalorder %s14, 0
    %p102 = por %p100, %p101
    %p103 = scmp.ne.s32.totalorder %s91, %s92
    %p104 = scmp.eq.s32.totalorder %s15, 7
    %p105 = por %p103, %p104
    %p107 = scmp.ne.s32.totalorder %s92, %s106
    %p108 = scmp.eq.s32.totalorder %s15, 0
    %p109 = por %p107, %p108
    %s110 = ssub.s32 %s16, %s28
    %s111 = ssub.s32 %s17, %s24
    %s112 = sor.u32 %s110, %s111
    %p113 = scmp.eq.s32.totalorder %s112, 0
    %s115 = sadd.s32 %s114, 1
    %s116 = scalar_select %p113, %s114, %s115
    %p119 = pneg %p113
    %p120 = scmp.eq.s32.totalorder %s9, 7
    %p121 = por %p119, %p120
    %p122 = scmp.ne.s32.totalorder %s114, %s117
    %p123 = scmp.eq.s32.totalorder %s9, 0
    %p124 = por %p122, %p123
    %p125 = scmp.ne.s32.totalorder %s114, %s117
    %p126 = scmp.eq.s32.totalorder %s14, 7
    %p127 = por %p125, %p126
    %p128 = scmp.ne.s32.totalorder %s117, %s118
    %p129 = scmp.eq.s32.totalorder %s14, 0
    %p130 = por %p128, %p129
    %p131 = scmp.ne.s32.totalorder %s117, %s118
    %p132 = scmp.eq.s32.totalorder %s15, 7
    %p133 = por %p131, %p132
    %p135 = scmp.ne.s32.totalorder %s118, %s134
    %p136 = scmp.eq.s32.totalorder %s15, 0
    %p137 = por %p135, %p136
    %p138 = scmp.le.s32.totalorder 1, %s9
    %p139 = scmp.lt.s32.totalorder %s9, 9
    %p140 = pnand %p138, %p139
    %p141 = pneg %p140
    // Predicated region
    $region9: #{tpu_custom_call.1} parent=5 // pred_check
      _
    $region10: #{tpu_custom_call.1} parent=5 // pred_check_branch
      %143 = sbr.rel (%p140) target = $region12
    $region11: #{tpu_custom_call.1} parent=5 // pred_region
      %s144 = ssub.s32 %s9, 1
      // Predicated region
      $region13: #{tpu_custom_call.1} parent=11 // pred_check
        %p145 = pneg %p102
      $region14: #{tpu_custom_call.1} parent=11 // pred_check_branch
        %147 = sbr.rel (%p145) target = $region16
      $region15: #{tpu_custom_call.1} parent=11 // pred_region
        _
      $region16: #{tpu_custom_call.1} parent=11 // pred_fallthru
        _
    $region12: #{tpu_custom_call.1} parent=5 // pred_fallthru
      _
    %p148 = scmp.lt.s32.totalorder %s9, 8
    // Predicated region
    $region17: #{tpu_custom_call.1} parent=5 // pred_check
      %p149 = pneg %p148
    $region18: #{tpu_custom_call.1} parent=5 // pred_check_branch
      %151 = sbr.rel (%p149) target = $region20
    $region19: #{tpu_custom_call.1} parent=5 // pred_region
      // Predicated region
      $region21: #{tpu_custom_call.1} parent=19 // pred_check
        %p152 = pneg %p45
      $region22: #{tpu_custom_call.1} parent=19 // pred_check_branch
        %154 = sbr.rel (%p152) target = $region24
      $region23: #{tpu_custom_call.1} parent=19 // pred_region
        %s155 = smul.u32 %s16, 4
        %s156 = sadd.s32 %s155, %s17
        %p157 = scmp.lt.s32.totalorder %s156, 7
        %s158 = scalar_select %p157, %s156, 7
        %s159 = smul.addr %s158, 2
        %s160 = smul.addr %s159, 4
        %s161 = scalar_lea.vmem %s0, %s160
        %s162 = smul.u32 %s16, 4
        %s163 = sadd.s32 %s162, %s17
      $region24: #{tpu_custom_call.1} parent=19 // pred_fallthru
        _
      // Predicated region
      $region25: #{tpu_custom_call.1} parent=19 // pred_check
        %p164 = pneg %p75
      $region26: #{tpu_custom_call.1} parent=19 // pred_check_branch
        %166 = sbr.rel (%p164) target = $region28
      $region27: #{tpu_custom_call.1} parent=19 // pred_region
        %s167 = smul.u32 %s16, 4
        %s168 = sadd.s32 %s167, %s17
        %p169 = scmp.lt.s32.totalorder %s168, 7
        %s170 = scalar_select %p169, %s168, 7
        %s171 = smul.addr %s170, 32
        %s172 = smul.addr %s171, 8
        %s173 = scalar_lea.vmem %s1, %s172
        %s174 = smul.u32 %s16, 4
        %s175 = sadd.s32 %s174, %s17
      $region28: #{tpu_custom_call.1} parent=19 // pred_fallthru
        _
    $region20: #{tpu_custom_call.1} parent=5 // pred_fallthru
      _
    %p176 = scmp.le.s32.totalorder 1, %s9
    %p177 = scmp.lt.s32.totalorder %s9, 9
    %p178 = pnand %p176, %p177
    %p179 = pneg %p178
    // Predicated region
    $region29: #{tpu_custom_call.1} parent=5 // pred_check
      _
    $region30: #{tpu_custom_call.1} parent=5 // pred_check_branch
      %181 = sbr.rel (%p178) target = $region32
    $region31: #{tpu_custom_call.1} parent=5 // pred_region
      %s182 = ssub.s32 %s9, 1
      %s183 = smul.u32 %s18, 4
      %s184 = sadd.s32 %s183, %s19
      %p185 = scmp.lt.s32.totalorder %s184, 7
      %s186 = scalar_select %p185, %s184, 7
      %s187 = smul.addr %s186, 2
      %s188 = smul.addr %s187, 4
      %s189 = scalar_lea.vmem %s0, %s188
      %p190 = pneg %p51
      %p191 = pneg %p48
      %s192 = smul.u32 %s18, 4
      %s193 = sadd.s32 %s192, %s19
      %p194 = scmp.lt.s32.totalorder %s193, 7
      %s195 = scalar_select %p194, %s193, 7
      %s196 = smul.addr %s195, 32
      %s197 = smul.addr %s196, 8
      %s198 = scalar_lea.vmem %s1, %s197
      %p199 = pneg %p81
      %p200 = pneg %p78
      %p201 = pneg %p102
      %p202 = pneg %p99
      %p203 = pneg %p130
      %p204 = pneg %p127
      %p205 = scmp.lt.s32.totalorder %s18, 1
      %s206 = scalar_select %p205, %s18, 1
      %p207 = scmp.lt.s32.totalorder %s19, 3
      %s208 = scalar_select %p207, %s19, 3
      %s209 = smul.addr %s206, 4
      %s210 = sadd.s32 %s208, %s209
      %s211 = scalar_lea.vmem %s3, %s210
      %s212 = smul.u32 %s18, 4
      %s213 = sadd.s32 %s212, %s19
      %p214 = scmp.lt.s32.totalorder %s213, 7
      %s215 = scalar_select %p214, %s213, 7
      %s216 = smul.addr %s215, 2
      %s217 = smul.addr %s216, 4
      %s218 = scalar_lea.vmem %s0, %s217
      %s219 = smul.u32 %s18, 4
      %s220 = sadd.s32 %s219, %s19
      %s221 = smul.u32 %s18, 4
      %s222 = sadd.s32 %s221, %s19
      %p223 = scmp.lt.s32.totalorder %s222, 7
      %s224 = scalar_select %p223, %s222, 7
      %s225 = smul.addr %s224, 32
      %s226 = smul.addr %s225, 8
      %s227 = scalar_lea.vmem %s1, %s226
      %s228 = smul.u32 %s18, 4
      %s229 = sadd.s32 %s228, %s19
      %p230 = scmp.lt.s32.totalorder %s18, 1
      %s231 = scalar_select %p230, %s18, 1
      %p232 = scmp.lt.s32.totalorder %s19, 3
      %s233 = scalar_select %p232, %s19, 3
      %s234 = smul.addr %s231, 4
      %s235 = sadd.s32 %s233, %s234
      %s236 = scalar_lea.vmem %s3, %s235
      %v237 = vld [vmem:[%s218] sm:$0x77]
      loop: start=0, step=1, limit=2
      $region33: #{tpu_custom_call.1} parent=31 // loop_pre_header
        _
      $region34: #{tpu_custom_call.1} parent=31 // loop_header
        %s239 = sphi 0, %s243
        %p240 = scmp.ge.s32.totalorder %s239, 2
        %v244 = vphi 1e+30, %v672
        %v245 = vphi 1e+30, %v673
        %v246 = vphi 1e+30, %v674
        %v247 = vphi 1e+30, %v675
      $region35: #{tpu_custom_call.1} parent=31 // loop_header_branch
        %242 = sbr.rel (%p240) target = $region39
      $region36: #{tpu_custom_call.1} parent=31 // loop_body
        %s248 = smul.u32 %s239, 128
        %s249 = sshra.s32 %s248, 3
        %s250 = sand.u32 %s248, 7
        %s251 = smul.u32 %s249, 2
        %s252 = smul.addr %s251, 8
        %s253 = scalar_lea.vmem %s2, %s252
        %v254 = vld [vmem:[%s253] sm:$0xff]
        %v255 = vld [vmem:[%s253 + $0x8] sm:$0xff]
        %v256 = vld [vmem:[%s253 + $0x10] sm:$0xff]
        %v257 = vld [vmem:[%s253 + $0x18] sm:$0xff]
        %v258 = vld [vmem:[%s253 + $0x20] sm:$0xff]
        %v259 = vld [vmem:[%s253 + $0x28] sm:$0xff]
        %v260 = vld [vmem:[%s253 + $0x30] sm:$0xff]
        %v261 = vld [vmem:[%s253 + $0x38] sm:$0xff]
        %v262 = vld [vmem:[%s253 + $0x40] sm:$0xff]
        %v263 = vld [vmem:[%s253 + $0x48] sm:$0xff]
        %v264 = vld [vmem:[%s253 + $0x50] sm:$0xff]
        %v265 = vld [vmem:[%s253 + $0x58] sm:$0xff]
        %v266 = vld [vmem:[%s253 + $0x60] sm:$0xff]
        %v267 = vld [vmem:[%s253 + $0x68] sm:$0xff]
        %v268 = vld [vmem:[%s253 + $0x70] sm:$0xff]
        %v269 = vld [vmem:[%s253 + $0x78] sm:$0xff]
        %v270 = vld [vmem:[%s253 + $0x80] sm:$0xff]
        %v271 = vld [vmem:[%s253 + $0x88] sm:$0xff]
        %v272 = vld [vmem:[%s253 + $0x90] sm:$0xff]
        %v273 = vld [vmem:[%s253 + $0x98] sm:$0xff]
        %v274 = vld [vmem:[%s253 + $0xa0] sm:$0xff]
        %v275 = vld [vmem:[%s253 + $0xa8] sm:$0xff]
        %v276 = vld [vmem:[%s253 + $0xb0] sm:$0xff]
        %v277 = vld [vmem:[%s253 + $0xb8] sm:$0xff]
        %v278 = vld [vmem:[%s253 + $0xc0] sm:$0xff]
        %v279 = vld [vmem:[%s253 + $0xc8] sm:$0xff]
        %v280 = vld [vmem:[%s253 + $0xd0] sm:$0xff]
        %v281 = vld [vmem:[%s253 + $0xd8] sm:$0xff]
        %v282 = vld [vmem:[%s253 + $0xe0] sm:$0xff]
        %v283 = vld [vmem:[%s253 + $0xe8] sm:$0xff]
        %v284 = vld [vmem:[%s253 + $0xf0] sm:$0xff]
        %v285 = vld [vmem:[%s253 + $0xf8] sm:$0xff]
        %s286 = scalar_lea.vmem %s227, %s248
        %v287 = vld [vmem:[%s286] sm:$0xff]
        %v288 = vld [vmem:[%s286 + $0x8] sm:$0xff]
        %v289 = vld [vmem:[%s286 + $0x10] sm:$0xff]
        %v290 = vld [vmem:[%s286 + $0x18] sm:$0xff]
        %v291 = vld [vmem:[%s286 + $0x20] sm:$0xff]
        %v292 = vld [vmem:[%s286 + $0x28] sm:$0xff]
        %v293 = vld [vmem:[%s286 + $0x30] sm:$0xff]
        %v294 = vld [vmem:[%s286 + $0x38] sm:$0xff]
        %v295 = vld [vmem:[%s286 + $0x40] sm:$0xff]
        %v296 = vld [vmem:[%s286 + $0x48] sm:$0xff]
        %v297 = vld [vmem:[%s286 + $0x50] sm:$0xff]
        %v298 = vld [vmem:[%s286 + $0x58] sm:$0xff]
        %v299 = vld [vmem:[%s286 + $0x60] sm:$0xff]
        %v300 = vld [vmem:[%s286 + $0x68] sm:$0xff]
        %v301 = vld [vmem:[%s286 + $0x70] sm:$0xff]
        %v302 = vld [vmem:[%s286 + $0x78] sm:$0xff]
        %304 = vset.pattern.permute.xlu0 0
        %305 = vperm.xlu0 %304, %v287
        %v306 = vpop.permute.xlu0 %305
        %309 = vset.pattern.permute.xlu0 0
        %310 = vperm.xlu0 %309, %v288
        %v311 = vpop.permute.xlu0 %310
        %314 = vset.pattern.permute.xlu0 0
        %315 = vperm.xlu0 %314, %v289
        %v316 = vpop.permute.xlu0 %315
        %319 = vset.pattern.permute.xlu0 0
        %320 = vperm.xlu0 %319, %v290
        %v321 = vpop.permute.xlu0 %320
        %324 = vset.pattern.permute.xlu0 0
        %325 = vperm.xlu0 %324, %v291
        %v326 = vpop.permute.xlu0 %325
        %329 = vset.pattern.permute.xlu0 0
        %330 = vperm.xlu0 %329, %v292
        %v331 = vpop.permute.xlu0 %330
        %334 = vset.pattern.permute.xlu0 0
        %335 = vperm.xlu0 %334, %v293
        %v336 = vpop.permute.xlu0 %335
        %339 = vset.pattern.permute.xlu0 0
        %340 = vperm.xlu0 %339, %v294
        %v341 = vpop.permute.xlu0 %340
        %344 = vset.pattern.permute.xlu0 0
        %345 = vperm.xlu0 %344, %v295
        %v346 = vpop.permute.xlu0 %345
        %349 = vset.pattern.permute.xlu0 0
        %350 = vperm.xlu0 %349, %v296
        %v351 = vpop.permute.xlu0 %350
        %354 = vset.pattern.permute.xlu0 0
        %355 = vperm.xlu0 %354, %v297
        %v356 = vpop.permute.xlu0 %355
        %359 = vset.pattern.permute.xlu0 0
        %360 = vperm.xlu0 %359, %v298
        %v361 = vpop.permute.xlu0 %360
        %364 = vset.pattern.permute.xlu0 0
        %365 = vperm.xlu0 %364, %v299
        %v366 = vpop.permute.xlu0 %365
        %369 = vset.pattern.permute.xlu0 0
        %370 = vperm.xlu0 %369, %v300
        %v371 = vpop.permute.xlu0 %370
        %374 = vset.pattern.permute.xlu0 0
        %375 = vperm.xlu0 %374, %v301
        %v376 = vpop.permute.xlu0 %375
        %379 = vset.pattern.permute.xlu0 0
        %380 = vperm.xlu0 %379, %v302
        %v381 = vpop.permute.xlu0 %380
        %v384 = vperm.slane %v237, 1
        %v385 = vperm.slane %v237, 5
        %v388 = vperm.slane %v384, 1
        %v389 = vperm.slane %v385, 1
        %vm390 = vcmp.ne.f32.partialorder %v306, %v388
        %vm391 = vcmp.ne.f32.partialorder %v306, %v389
        %vm392 = vcmp.ne.f32.partialorder %v311, %v388
        %vm393 = vcmp.ne.f32.partialorder %v311, %v389
        %vm394 = vcmp.ne.f32.partialorder %v316, %v388
        %vm395 = vcmp.ne.f32.partialorder %v316, %v389
        %vm396 = vcmp.ne.f32.partialorder %v321, %v388
        %vm397 = vcmp.ne.f32.partialorder %v321, %v389
        %vm398 = vcmp.ne.f32.partialorder %v326, %v388
        %vm399 = vcmp.ne.f32.partialorder %v326, %v389
        %vm400 = vcmp.ne.f32.partialorder %v331, %v388
        %vm401 = vcmp.ne.f32.partialorder %v331, %v389
        %vm402 = vcmp.ne.f32.partialorder %v336, %v388
        %vm403 = vcmp.ne.f32.partialorder %v336, %v389
        %vm404 = vcmp.ne.f32.partialorder %v341, %v388
        %vm405 = vcmp.ne.f32.partialorder %v341, %v389
        %vm406 = vcmp.ne.f32.partialorder %v346, %v388
        %vm407 = vcmp.ne.f32.partialorder %v346, %v389
        %vm408 = vcmp.ne.f32.partialorder %v351, %v388
        %vm409 = vcmp.ne.f32.partialorder %v351, %v389
        %vm410 = vcmp.ne.f32.partialorder %v356, %v388
        %vm411 = vcmp.ne.f32.partialorder %v356, %v389
        %vm412 = vcmp.ne.f32.partialorder %v361, %v388
        %vm413 = vcmp.ne.f32.partialorder %v361, %v389
        %vm414 = vcmp.ne.f32.partialorder %v366, %v388
        %vm415 = vcmp.ne.f32.partialorder %v366, %v389
        %vm416 = vcmp.ne.f32.partialorder %v371, %v388
        %vm417 = vcmp.ne.f32.partialorder %v371, %v389
        %vm418 = vcmp.ne.f32.partialorder %v376, %v388
        %vm419 = vcmp.ne.f32.partialorder %v376, %v389
        %vm420 = vcmp.ne.f32.partialorder %v381, %v388
        %vm421 = vcmp.ne.f32.partialorder %v381, %v389
        %v422 = vsel %vm390, %v254, 1e+30
        %v423 = vsel %vm391, %v255, 1e+30
        %v424 = vsel %vm392, %v256, 1e+30
        %v425 = vsel %vm393, %v257, 1e+30
        %v426 = vsel %vm394, %v258, 1e+30
        %v427 = vsel %vm395, %v259, 1e+30
        %v428 = vsel %vm396, %v260, 1e+30
        %v429 = vsel %vm397, %v261, 1e+30
        %v430 = vsel %vm398, %v262, 1e+30
        %v431 = vsel %vm399, %v263, 1e+30
        %v432 = vsel %vm400, %v264, 1e+30
        %v433 = vsel %vm401, %v265, 1e+30
        %v434 = vsel %vm402, %v266, 1e+30
        %v435 = vsel %vm403, %v267, 1e+30
        %v436 = vsel %vm404, %v268, 1e+30
        %v437 = vsel %vm405, %v269, 1e+30
        %v438 = vsel %vm406, %v270, 1e+30
        %v439 = vsel %vm407, %v271, 1e+30
        %v440 = vsel %vm408, %v272, 1e+30
        %v441 = vsel %vm409, %v273, 1e+30
        %v442 = vsel %vm410, %v274, 1e+30
        %v443 = vsel %vm411, %v275, 1e+30
        %v444 = vsel %vm412, %v276, 1e+30
        %v445 = vsel %vm413, %v277, 1e+30
        %v446 = vsel %vm414, %v278, 1e+30
        %v447 = vsel %vm415, %v279, 1e+30
        %v448 = vsel %vm416, %v280, 1e+30
        %v449 = vsel %vm417, %v281, 1e+30
        %v450 = vsel %vm418, %v282, 1e+30
        %v451 = vsel %vm419, %v283, 1e+30
        %v452 = vsel %vm420, %v284, 1e+30
        %v453 = vsel %vm421, %v285, 1e+30
        %v454 = vmin.f32 %v422, %v426
        %v455 = vmin.f32 %v424, %v428
        %v456 = vmin.f32 %v454, %v430
        %v457 = vmin.f32 %v455, %v432
        %v458 = vmin.f32 %v456, %v434
        %v459 = vmin.f32 %v457, %v436
        %v460 = vmin.f32 %v458, %v438
        %v461 = vmin.f32 %v459, %v440
        %v462 = vmin.f32 %v460, %v442
        %v463 = vmin.f32 %v461, %v444
        %v464 = vmin.f32 %v462, %v446
        %v465 = vmin.f32 %v463, %v448
        %v466 = vmin.f32 %v464, %v450
        %v467 = vmin.f32 %v465, %v452
        %v468 = vmin.f32 %v466, %v467
        %v469 = vrot.slane %v468, 4
        %v470 = vmin.f32 %v468, %v469
        %v471 = vrot.slane %v470, 2
        %v472 = vmin.f32 %v470, %v471
        %v473 = vrot.slane %v472, 1
        %v474 = vmin.f32 %v472, %v473
        %v475 = vmin.f32 %v423, %v427
        %v476 = vmin.f32 %v425, %v429
        %v477 = vmin.f32 %v475, %v431
        %v478 = vmin.f32 %v476, %v433
        %v479 = vmin.f32 %v477, %v435
        %v480 = vmin.f32 %v478, %v437
        %v481 = vmin.f32 %v479, %v439
        %v482 = vmin.f32 %v480, %v441
        %v483 = vmin.f32 %v481, %v443
        %v484 = vmin.f32 %v482, %v445
        %v485 = vmin.f32 %v483, %v447
        %v486 = vmin.f32 %v484, %v449
        %v487 = vmin.f32 %v485, %v451
        %v488 = vmin.f32 %v486, %v453
        %v489 = vmin.f32 %v487, %v488
        %v490 = vrot.slane %v489, 4
        %v491 = vmin.f32 %v489, %v490
        %v492 = vrot.slane %v491, 2
        %v493 = vmin.f32 %v491, %v492
        %v494 = vrot.slane %v493, 1
        %v495 = vmin.f32 %v493, %v494
        %496 = vset.pattern.permute.xlu0 1
        %497 = vperm.xlu0 %496, %v287
        %v498 = vpop.permute.xlu0 %497
        %500 = vset.pattern.permute.xlu0 1
        %501 = vperm.xlu0 %500, %v288
        %v502 = vpop.permute.xlu0 %501
        %504 = vset.pattern.permute.xlu0 1
        %505 = vperm.xlu0 %504, %v289
        %v506 = vpop.permute.xlu0 %505
        %508 = vset.pattern.permute.xlu0 1
        %509 = vperm.xlu0 %508, %v290
        %v510 = vpop.permute.xlu0 %509
        %512 = vset.pattern.permute.xlu0 1
        %513 = vperm.xlu0 %512, %v291
        %v514 = vpop.permute.xlu0 %513
        %516 = vset.pattern.permute.xlu0 1
        %517 = vperm.xlu0 %516, %v292
        %v518 = vpop.permute.xlu0 %517
        %520 = vset.pattern.permute.xlu0 1
        %521 = vperm.xlu0 %520, %v293
        %v522 = vpop.permute.xlu0 %521
        %524 = vset.pattern.permute.xlu0 1
        %525 = vperm.xlu0 %524, %v294
        %v526 = vpop.permute.xlu0 %525
        %528 = vset.pattern.permute.xlu0 1
        %529 = vperm.xlu0 %528, %v295
        %v530 = vpop.permute.xlu0 %529
        %532 = vset.pattern.permute.xlu0 1
        %533 = vperm.xlu0 %532, %v296
        %v534 = vpop.permute.xlu0 %533
        %536 = vset.pattern.permute.xlu0 1
        %537 = vperm.xlu0 %536, %v297
        %v538 = vpop.permute.xlu0 %537
        %540 = vset.pattern.permute.xlu0 1
        %541 = vperm.xlu0 %540, %v298
        %v542 = vpop.permute.xlu0 %541
        %544 = vset.pattern.permute.xlu0 1
        %545 = vperm.xlu0 %544, %v299
        %v546 = vpop.permute.xlu0 %545
        %548 = vset.pattern.permute.xlu0 1
        %549 = vperm.xlu0 %548, %v300
        %v550 = vpop.permute.xlu0 %549
        %552 = vset.pattern.permute.xlu0 1
        %553 = vperm.xlu0 %552, %v301
        %v554 = vpop.permute.xlu0 %553
        %556 = vset.pattern.permute.xlu0 1
        %557 = vperm.xlu0 %556, %v302
        %v558 = vpop.permute.xlu0 %557
        %v560 = vperm.slane %v237, 2
        %v561 = vperm.slane %v237, 6
        %v564 = vperm.slane %v560, 2
        %v565 = vperm.slane %v561, 2
        %vm566 = vcmp.ne.f32.partialorder %v498, %v564
        %vm567 = vcmp.ne.f32.partialorder %v498, %v565
        %vm568 = vcmp.ne.f32.partialorder %v502, %v564
        %vm569 = vcmp.ne.f32.partialorder %v502, %v565
        %vm570 = vcmp.ne.f32.partialorder %v506, %v564
        %vm571 = vcmp.ne.f32.partialorder %v506, %v565
        %vm572 = vcmp.ne.f32.partialorder %v510, %v564
        %vm573 = vcmp.ne.f32.partialorder %v510, %v565
        %vm574 = vcmp.ne.f32.partialorder %v514, %v564
        %vm575 = vcmp.ne.f32.partialorder %v514, %v565
        %vm576 = vcmp.ne.f32.partialorder %v518, %v564
        %vm577 = vcmp.ne.f32.partialorder %v518, %v565
        %vm578 = vcmp.ne.f32.partialorder %v522, %v564
        %vm579 = vcmp.ne.f32.partialorder %v522, %v565
        %vm580 = vcmp.ne.f32.partialorder %v526, %v564
        %vm581 = vcmp.ne.f32.partialorder %v526, %v565
        %vm582 = vcmp.ne.f32.partialorder %v530, %v564
        %vm583 = vcmp.ne.f32.partialorder %v530, %v565
        %vm584 = vcmp.ne.f32.partialorder %v534, %v564
        %vm585 = vcmp.ne.f32.partialorder %v534, %v565
        %vm586 = vcmp.ne.f32.partialorder %v538, %v564
        %vm587 = vcmp.ne.f32.partialorder %v538, %v565
        %vm588 = vcmp.ne.f32.partialorder %v542, %v564
        %vm589 = vcmp.ne.f32.partialorder %v542, %v565
        %vm590 = vcmp.ne.f32.partialorder %v546, %v564
        %vm591 = vcmp.ne.f32.partialorder %v546, %v565
        %vm592 = vcmp.ne.f32.partialorder %v550, %v564
        %vm593 = vcmp.ne.f32.partialorder %v550, %v565
        %vm594 = vcmp.ne.f32.partialorder %v554, %v564
        %vm595 = vcmp.ne.f32.partialorder %v554, %v565
        %vm596 = vcmp.ne.f32.partialorder %v558, %v564
        %vm597 = vcmp.ne.f32.partialorder %v558, %v565
        %v598 = vsel %vm566, %v254, 1e+30
        %v599 = vsel %vm567, %v255, 1e+30
        %v600 = vsel %vm568, %v256, 1e+30
        %v601 = vsel %vm569, %v257, 1e+30
        %v602 = vsel %vm570, %v258, 1e+30
        %v603 = vsel %vm571, %v259, 1e+30
        %v604 = vsel %vm572, %v260, 1e+30
        %v605 = vsel %vm573, %v261, 1e+30
        %v606 = vsel %vm574, %v262, 1e+30
        %v607 = vsel %vm575, %v263, 1e+30
        %v608 = vsel %vm576, %v264, 1e+30
        %v609 = vsel %vm577, %v265, 1e+30
        %v610 = vsel %vm578, %v266, 1e+30
        %v611 = vsel %vm579, %v267, 1e+30
        %v612 = vsel %vm580, %v268, 1e+30
        %v613 = vsel %vm581, %v269, 1e+30
        %v614 = vsel %vm582, %v270, 1e+30
        %v615 = vsel %vm583, %v271, 1e+30
        %v616 = vsel %vm584, %v272, 1e+30
        %v617 = vsel %vm585, %v273, 1e+30
        %v618 = vsel %vm586, %v274, 1e+30
        %v619 = vsel %vm587, %v275, 1e+30
        %v620 = vsel %vm588, %v276, 1e+30
        %v621 = vsel %vm589, %v277, 1e+30
        %v622 = vsel %vm590, %v278, 1e+30
        %v623 = vsel %vm591, %v279, 1e+30
        %v624 = vsel %vm592, %v280, 1e+30
        %v625 = vsel %vm593, %v281, 1e+30
        %v626 = vsel %vm594, %v282, 1e+30
        %v627 = vsel %vm595, %v283, 1e+30
        %v628 = vsel %vm596, %v284, 1e+30
        %v629 = vsel %vm597, %v285, 1e+30
        %v630 = vmin.f32 %v598, %v602
        %v631 = vmin.f32 %v600, %v604
        %v632 = vmin.f32 %v630, %v606
        %v633 = vmin.f32 %v631, %v608
        %v634 = vmin.f32 %v632, %v610
        %v635 = vmin.f32 %v633, %v612
        %v636 = vmin.f32 %v634, %v614
        %v637 = vmin.f32 %v635, %v616
        %v638 = vmin.f32 %v636, %v618
        %v639 = vmin.f32 %v637, %v620
        %v640 = vmin.f32 %v638, %v622
        %v641 = vmin.f32 %v639, %v624
        %v642 = vmin.f32 %v640, %v626
        %v643 = vmin.f32 %v641, %v628
        %v644 = vmin.f32 %v642, %v643
        %v645 = vrot.slane %v644, 4
        %v646 = vmin.f32 %v644, %v645
        %v647 = vrot.slane %v646, 2
        %v648 = vmin.f32 %v646, %v647
        %v649 = vrot.slane %v648, 1
        %v650 = vmin.f32 %v648, %v649
        %v651 = vmin.f32 %v599, %v603
        %v652 = vmin.f32 %v601, %v605
        %v653 = vmin.f32 %v651, %v607
        %v654 = vmin.f32 %v652, %v609
        %v655 = vmin.f32 %v653, %v611
        %v656 = vmin.f32 %v654, %v613
        %v657 = vmin.f32 %v655, %v615
        %v658 = vmin.f32 %v656, %v617
        %v659 = vmin.f32 %v657, %v619
        %v660 = vmin.f32 %v658, %v621
        %v661 = vmin.f32 %v659, %v623
        %v662 = vmin.f32 %v660, %v625
        %v663 = vmin.f32 %v661, %v627
        %v664 = vmin.f32 %v662, %v629
        %v665 = vmin.f32 %v663, %v664
        %v666 = vrot.slane %v665, 4
        %v667 = vmin.f32 %v665, %v666
        %v668 = vrot.slane %v667, 2
        %v669 = vmin.f32 %v667, %v668
        %v670 = vrot.slane %v669, 1
        %v671 = vmin.f32 %v669, %v670
        %v672 = vmin.f32 %v244, %v474
        %v673 = vmin.f32 %v245, %v495
        %v674 = vmin.f32 %v246, %v650
        %v675 = vmin.f32 %v247, %v671
      $region37: #{tpu_custom_call.1} parent=31 // loop_footer
        %s243 = sadd.s32 1, %s239
      $region38: #{tpu_custom_call.1} parent=31 // loop_footer_branch
        %238 = sbr.rel target = $region34
      $region39: #{tpu_custom_call.1} parent=31 // loop_exit
        _
      %vm676 = vcmp.gt.f32.partialorder %v246, 5e+29
      %vm677 = vcmp.gt.f32.partialorder %v247, 5e+29
      %v678 = vsel %vm676, 0.0, %v246
      %v679 = vsel %vm677, 0.0, %v247
      %vm680 = vcmp.gt.f32.partialorder %v244, 5e+29
      %vm681 = vcmp.gt.f32.partialorder %v245, 5e+29
      %v682 = vsel %vm680, 0.0, %v244
      %v683 = vsel %vm681, 0.0, %v245
      %v684 = vrsqrt.pop %v682
      %v685 = vmul.f32 %v684, %v682
      %v686 = vmul.f32 %v685, %v684
      %v687 = vmul.f32 0.5, %v686
      %v688 = vsub.f32 1.5, %v687
      %v689 = vmul.f32 %v684, %v688
      %v690 = vmul.f32 %v682, %v689
      %vm691 = vcmp.eq.f32.partialorder %v682, inf
      %v692 = vsel %vm691, %v682, %v690
      %vm693 = vcmp.eq.f32.partialorder %v682, 0.0
      %v694 = vand.u32 %v682, 2147483648
      %v695 = vsel %vm693, %v694, %v692
      %v696 = vrsqrt.pop %v683
      %v697 = vmul.f32 %v696, %v683
      %v698 = vmul.f32 %v697, %v696
      %v699 = vmul.f32 0.5, %v698
      %v700 = vsub.f32 1.5, %v699
      %v701 = vmul.f32 %v696, %v700
      %v702 = vmul.f32 %v683, %v701
      %vm703 = vcmp.eq.f32.partialorder %v683, inf
      %v704 = vsel %vm703, %v683, %v702
      %vm705 = vcmp.eq.f32.partialorder %v683, 0.0
      %v706 = vand.u32 %v683, 2147483648
      %v707 = vsel %vm705, %v706, %v704
      %v708 = vadd.f32 %v695, 0.0001
      %v709 = vadd.f32 %v707, 0.0001
      %v710 = vfloor.f32 %v708
      %v711 = vfloor.f32 %v709
      %v712 = vmul.f32 %v710, %v710
      %v713 = vmul.f32 %v711, %v711
      %v714 = vadd.f32 %v678, %v712
      %v715 = vadd.f32 %v679, %v713
      %v718 = vrot.slane %v715, 4
      %vm719 = vcmask 1043456
      %v720 = vsel %vm719, %v714, %v718
      %v722 = vmul.f32 %v237, %v720
      %v724 = vperm.slane %v722, 0
      %v725 = vperm.slane %v722, 4
      %vm728 = vcmask 1040384
      %v729 = vsel %vm728, %v724, 0.0
      %v730 = vsel %vm728, %v725, 0.0
      %v731 = vadd.f32 %v729, %v730
      %732 = vadd.xlane.f32.xlu0 %v731
      %v733 = vpop.xlane.xlu0 %732
      %vm734 = vcmask 0
      %735 = vst.msk [vmem:[%s236] sm:$0x1] %vm734, %v733
      %p736 = scmp.lt.s32.totalorder %s18, 1
      %s737 = scalar_select %p736, %s18, 1
      %p738 = scmp.lt.s32.totalorder %s19, 3
      %s739 = scalar_select %p738, %s19, 3
      %s740 = smul.addr %s737, 4
      %s741 = sadd.s32 %s739, %s740
      %s742 = scalar_lea.vmem %s3, %s741
      // Predicated region
      $region40: #{tpu_custom_call.1} parent=31 // pred_check
        %p743 = pneg %p127
      $region41: #{tpu_custom_call.1} parent=31 // pred_check_branch
        %745 = sbr.rel (%p743) target = $region43
      $region42: #{tpu_custom_call.1} parent=31 // pred_region
        _
      $region43: #{tpu_custom_call.1} parent=31 // pred_fallthru
        _
    $region32: #{tpu_custom_call.1} parent=5 // pred_fallthru
      _
    %p746 = scmp.le.s32.totalorder 2, %s9
    // Predicated region
    $region44: #{tpu_custom_call.1} parent=5 // pred_check
      %p747 = pneg %p746
    $region45: #{tpu_custom_call.1} parent=5 // pred_check_branch
      %749 = sbr.rel (%p747) target = $region47
    $region46: #{tpu_custom_call.1} parent=5 // pred_region
      %s750 = ssub.s32 %s9, 2
      // Predicated region
      $region48: #{tpu_custom_call.1} parent=46 // pred_check
        %p751 = pneg %p133
      $region49: #{tpu_custom_call.1} parent=46 // pred_check_branch
        %753 = sbr.rel (%p751) target = $region51
      $region50: #{tpu_custom_call.1} parent=46 // pred_region
        %p754 = scmp.lt.s32.totalorder %s20, 1
        %s755 = scalar_select %p754, %s20, 1
        %p756 = scmp.lt.s32.totalorder %s21, 3
        %s757 = scalar_select %p756, %s21, 3
        %s758 = smul.addr %s755, 4
        %s759 = sadd.s32 %s757, %s758
        %s760 = scalar_lea.vmem %s3, %s759
      $region51: #{tpu_custom_call.1} parent=46 // pred_fallthru
        _
    $region47: #{tpu_custom_call.1} parent=5 // pred_fallthru
      _
  $region6: #{tpu_custom_call.1} parent=0 // loop_footer
    %s13 = sadd.s32 1, %s9
  $region7: #{tpu_custom_call.1} parent=0 // loop_footer_branch
    %8 = sbr.rel target = $region3
  $region8: #{tpu_custom_call.1} parent=0 // loop_exit
    _

</llo_original>
